<compile_context>
chip_gen: v7x
topology: tpu7x:2x2x1
jax: 0.10.0
libtpu: 0.0.40
codegen_flags: <defaults>
</compile_context>

<pallas_src>
import functools

import jax
import jax.numpy as jnp
import numpy as np
from jax.experimental import pallas as pl
from jax.experimental.pallas import tpu as pltpu


# ----------------------------- Pallas kernel ---------------------------------

def _transition_kernel(x_ref, sb_ref, p_ref, w_ref, o_ref, pooled_ref,
                       *, th, tw, wo):
    # x_ref     : (Cin, th*tw)  raw NCHW pixels; Cin on sublanes, `th` whole
    #                           row-pairs (tw = 2*W lanes each) on lanes
    # sb_ref    : (2, Cin, tw)  folded-BN scale (row 0) / bias (row 1),
    #                           pre-broadcast along lanes in the wrapper
    # p_ref     : (tw, wo)      0/1 pooling matrix for ONE row-pair
    # w_ref     : (Cout, Cin)   1x1 conv weight with the 0.25 average folded in
    # o_ref     : (Cout, th*wo) pooled output pixels, lane-dense
    # pooled_ref: VMEM scratch (Cin, th*wo)
    s = sb_ref[0]                              # (Cin, tw) -- hoisted, loaded once
    b = sb_ref[1]
    p = p_ref[...]
    for t in range(th):                        # static, unrolled (th kept small)
        xt = x_ref[:, t * tw:(t + 1) * tw]     # (Cin, tw): one row-pair
        yt = jnp.maximum(xt * s + b, 0.0)      # BN affine + ReLU
        # 2x2 sum-pool of this row-pair: one small MXU matmul, exact (0/1 P,
        # f32 accumulation).  Output columns are the Wo pooled pixels.
        pooled_ref[:, t * wo:(t + 1) * wo] = jnp.dot(
            yt, p, preferred_element_type=jnp.float32)
    # 1x1 conv == channel matmul (pool and 1x1 conv commute exactly).
    o_ref[...] = jnp.dot(w_ref[...], pooled_ref[...],
                         preferred_element_type=jnp.float32)


# ------------------------------- tiling ---------------------------------------

def _pick_th(n, ho, wo, cin, tw, vmem_budget_bytes=4 << 20, max_unroll=32):
    """Row-pairs per block.

    Constraints: th | Ho; lane-dense blocks (th*wo multiple of 128, which also
    makes th*tw a multiple of 128) unless th == Ho (full-extent blocks are
    always legal); input tile within a VMEM budget (double-buffer headroom on
    v7x's 64 MiB VMEM); bounded unroll; and >= 2 total grid steps when
    possible so both v7x TensorCores get work.
    """
    def ok(th):
        if ho % th:
            return False
        full = th == ho
        if not full and (th * wo) % 128:
            return False
        if cin * th * tw * 4 > vmem_budget_bytes:
            return False
        if th > max_unroll:
            return False
        return True

    cands = [t for t in range(1, ho + 1) if ok(t)]
    if not cands:
        return ho                      # fallback: full-extent blocks
    multi = [t for t in cands if n * (ho // t) >= 2]
    pool = multi if multi else cands
    return max(pool)                   # biggest tile that fits the budget


# ------------------------------ forward pass ---------------------------------

def transition_forward(params, x):
    """Transition.forward: avg_pool2d(conv1x1(relu(bn(x))), 2).  x is NCHW."""
    N, Cin, H, W = x.shape
    assert H % 2 == 0 and W % 2 == 0
    Ho, Wo = H // 2, W // 2
    TW = 2 * W                                              # lanes per row-pair
    w = params["conv_w"].reshape(params["conv_w"].shape[0], Cin)   # (Cout, Cin)
    Cout = w.shape[0]
    w_eff = (w * 0.25).astype(jnp.float32)                  # fold the 2x2 average

    # Folded BN scale/bias packed into one tiny constant, pre-broadcast along
    # lanes so the kernel never emits a broadcast_in_dim in its inner loop.
    sb = jnp.stack([params["bn_scale"], params["bn_bias"]]).astype(jnp.float32)
    sb = jnp.broadcast_to(sb[:, :, None], (2, Cin, TW))

    # 0/1 pooling matrix for a single row-pair: lane w2 = r*W + w  ->  col w//2.
    col = (jnp.arange(TW) % W) // 2
    pmat = (col[:, None] == jnp.arange(Wo)[None, :]).astype(jnp.float32)

    th = _pick_th(N, Ho, Wo, Cin, TW)
    grid = (N, Ho // th)

    xv = x.reshape(N, Cin, H * W)            # FREE view: no HBM materialization
    kernel = functools.partial(_transition_kernel, th=th, tw=TW, wo=Wo)

    out = pl.pallas_call(
        kernel,
        out_shape=jax.ShapeDtypeStruct((N, Cout, Ho * Wo), jnp.float32),
        grid=grid,
        in_specs=[
            pl.BlockSpec((None, Cin, th * TW), lambda n, i: (n, 0, i)),
            pl.BlockSpec((2, Cin, TW), lambda n, i: (0, 0, 0)),
            pl.BlockSpec((TW, Wo), lambda n, i: (0, 0)),
            pl.BlockSpec((Cout, Cin), lambda n, i: (0, 0)),
        ],
        out_specs=pl.BlockSpec((None, Cout, th * Wo), lambda n, i: (n, 0, i)),
        scratch_shapes=[pltpu.VMEM((Cin, th * Wo), jnp.float32)],
        compiler_params=pltpu.CompilerParams(
            dimension_semantics=("parallel", "parallel"),
            vmem_limit_bytes=32 * 1024 * 1024),
    )(xv, sb, pmat, w_eff)

    return out.reshape(N, Cout, Ho, Wo)      # FREE view


# ----------------------- pure-JAX reference (for checking) -------------------

def transition_reference(params, x):
    scale = params["bn_scale"].reshape(1, -1, 1, 1)
    bias = params["bn_bias"].reshape(1, -1, 1, 1)
    y = jnp.maximum(x * scale + bias, 0.0)
    w = params["conv_w"][:, :, 0, 0]
    out = jnp.einsum("oc,nchw->nohw", w, y)
    N, Co, H, W = out.shape
    return out.reshape(N, Co, H // 2, 2, W // 2, 2).mean(axis=(3, 5))


# ------------------------- deterministic parameter init ----------------------

def init_params(key, in_planes, out_planes):
    k1, k2, k3, k4, k5 = jax.random.split(key, 5)
    gamma = 1.0 + 0.1 * jax.random.normal(k1, (in_planes,), jnp.float32)
    beta = 0.1 * jax.random.normal(k2, (in_planes,), jnp.float32)
    mean = 0.1 * jax.random.normal(k3, (in_planes,), jnp.float32)
    var = jnp.abs(jax.random.normal(k4, (in_planes,), jnp.float32)) + 0.5
    eps = 1e-5
    scale = gamma / jnp.sqrt(var + eps)
    bias = beta - mean * scale
    conv_w = 0.1 * jax.random.normal(k5, (out_planes, in_planes, 1, 1),
                                     jnp.float32)
    return {"bn_scale": scale, "bn_bias": bias, "conv_w": conv_w}


# --------------------------------- main ---------------------------------------

if __name__ == "__main__":
    key = jax.random.PRNGKey(0)
    kp, kx = jax.random.split(key)
    in_planes, out_planes = 32, 16
    params = init_params(kp, in_planes, out_planes)
    # NCHW input, as the PyTorch module expects: 2 x 32 x 32 x 32
    x = jax.random.normal(kx, (2, in_planes, 32, 32), jnp.float32)

    fwd = jax.jit(transition_forward)
    out = fwd(params, x)
    jax.block_until_ready(out)
    assert out.shape == (2, out_planes, 16, 16), out.shape

    ref = transition_reference(params, x)
    np.testing.assert_allclose(np.asarray(out), np.asarray(ref),
                               rtol=2e-3, atol=2e-3)
    print("KERNEL_OK")
</pallas_src>

<mosaic_0001>
module attributes {stable_mosaic.version = 11 : i64} {
  func.func @_transition_kernel(%arg0: i32, %arg1: i32, %arg2: memref<1x32x1024xf32, #tpu.memory_space<vmem>>, %arg3: memref<2x32x64xf32, #tpu.memory_space<vmem>>, %arg4: memref<64x16xf32, #tpu.memory_space<vmem>>, %arg5: memref<16x32xf32, #tpu.memory_space<vmem>>, %arg6: memref<1x16x256xf32, #tpu.memory_space<vmem>>, %arg7: memref<32x256xf32, #tpu.memory_space<vmem>>) attributes {dimension_semantics = [#tpu.dimension_semantics<parallel>, #tpu.dimension_semantics<parallel>], iteration_bounds = array<i64: 2, 1>, scalar_prefetch = 0 : i64, scratch_operands = 1 : i64, tpu.core_type = #tpu.core_type<tc>, window_params = [{transform_indices = @transform_0, window_bounds = array<i64: 1, 32, 1024>}, {pipeline_mode = #tpu.pipeline_mode<synchronous>, transform_indices = @transform_1, window_bounds = array<i64: 2, 32, 64>}, {pipeline_mode = #tpu.pipeline_mode<synchronous>, transform_indices = @transform_2, window_bounds = array<i64: 64, 16>}, {pipeline_mode = #tpu.pipeline_mode<synchronous>, transform_indices = @transform_3, window_bounds = array<i64: 16, 32>}, {transform_indices = @transform_4, window_bounds = array<i64: 1, 16, 256>}]} {
    %c0 = arith.constant 0 : index
    %c0_0 = arith.constant 0 : index
    %c0_1 = arith.constant 0 : index
    %0 = vector.load %arg3[%c0, %c0_0, %c0_1] : memref<2x32x64xf32, #tpu.memory_space<vmem>>, vector<1x32x64xf32>
    %1 = vector.shape_cast %0 : vector<1x32x64xf32> to vector<32x64xf32>
    %c1 = arith.constant 1 : index
    %c0_2 = arith.constant 0 : index
    %c0_3 = arith.constant 0 : index
    %2 = vector.load %arg3[%c1, %c0_2, %c0_3] : memref<2x32x64xf32, #tpu.memory_space<vmem>>, vector<1x32x64xf32>
    %3 = vector.shape_cast %2 : vector<1x32x64xf32> to vector<32x64xf32>
    %c0_4 = arith.constant 0 : index
    %c0_5 = arith.constant 0 : index
    %4 = vector.load %arg4[%c0_4, %c0_5] : memref<64x16xf32, #tpu.memory_space<vmem>>, vector<64x16xf32>
    %c0_6 = arith.constant 0 : index
    %c0_7 = arith.constant 0 : index
    %c0_8 = arith.constant 0 : index
    %5 = vector.load %arg2[%c0_6, %c0_7, %c0_8] : memref<1x32x1024xf32, #tpu.memory_space<vmem>>, vector<1x32x64xf32>
    %6 = vector.shape_cast %5 : vector<1x32x64xf32> to vector<32x64xf32>
    %7 = arith.mulf %6, %1 : vector<32x64xf32>
    %8 = arith.addf %7, %3 : vector<32x64xf32>
    %cst = arith.constant 0.000000e+00 : f32
    %9 = vector.broadcast %cst : f32 to vector<32x64xf32>
    %10 = arith.maximumf %8, %9 : vector<32x64xf32>
    %cst_9 = arith.constant dense<0.000000e+00> : vector<32x16xf32>
    %11 = tpu.matmul %10, %4, %cst_9 {dimension_numbers = #tpu.dot_dimension_numbers<[1], [0], [0], [1], [0, 0, 1, 1], [], []>} : vector<32x64xf32>, vector<64x16xf32>, vector<32x16xf32> -> vector<32x16xf32>
    %c0_10 = arith.constant 0 : index
    %c0_11 = arith.constant 0 : index
    %12 = vector.load %arg7[%c0_10, %c0_11] : memref<32x256xf32, #tpu.memory_space<vmem>>, vector<32x16xf32>
    tpu.vector_store %arg7[%c0_10, %c0_11], %11 {strides = array<i32>} : memref<32x256xf32, #tpu.memory_space<vmem>>, vector<32x16xf32>,
    %c0_12 = arith.constant 0 : index
    %c0_13 = arith.constant 0 : index
    %c64 = arith.constant 64 : index
    %13 = vector.load %arg2[%c0_12, %c0_13, %c64] : memref<1x32x1024xf32, #tpu.memory_space<vmem>>, vector<1x32x64xf32>
    %14 = vector.shape_cast %13 : vector<1x32x64xf32> to vector<32x64xf32>
    %15 = arith.mulf %14, %1 : vector<32x64xf32>
    %16 = arith.addf %15, %3 : vector<32x64xf32>
    %cst_14 = arith.constant 0.000000e+00 : f32
    %17 = vector.broadcast %cst_14 : f32 to vector<32x64xf32>
    %18 = arith.maximumf %16, %17 : vector<32x64xf32>
    %cst_15 = arith.constant dense<0.000000e+00> : vector<32x16xf32>
    %19 = tpu.matmul %18, %4, %cst_15 {dimension_numbers = #tpu.dot_dimension_numbers<[1], [0], [0], [1], [0, 0, 1, 1], [], []>} : vector<32x64xf32>, vector<64x16xf32>, vector<32x16xf32> -> vector<32x16xf32>
    %c0_16 = arith.constant 0 : index
    %c16 = arith.constant 16 : index
    %20 = vector.load %arg7[%c0_16, %c16] : memref<32x256xf32, #tpu.memory_space<vmem>>, vector<32x16xf32>
    tpu.vector_store %arg7[%c0_16, %c16], %19 {strides = array<i32>} : memref<32x256xf32, #tpu.memory_space<vmem>>, vector<32x16xf32>,
    %c0_17 = arith.constant 0 : index
    %c0_18 = arith.constant 0 : index
    %c128 = arith.constant 128 : index
    %21 = vector.load %arg2[%c0_17, %c0_18, %c128] : memref<1x32x1024xf32, #tpu.memory_space<vmem>>, vector<1x32x64xf32>
    %22 = vector.shape_cast %21 : vector<1x32x64xf32> to vector<32x64xf32>
    %23 = arith.mulf %22, %1 : vector<32x64xf32>
    %24 = arith.addf %23, %3 : vector<32x64xf32>
    %cst_19 = arith.constant 0.000000e+00 : f32
    %25 = vector.broadcast %cst_19 : f32 to vector<32x64xf32>
    %26 = arith.maximumf %24, %25 : vector<32x64xf32>
    %cst_20 = arith.constant dense<0.000000e+00> : vector<32x16xf32>
    %27 = tpu.matmul %26, %4, %cst_20 {dimension_numbers = #tpu.dot_dimension_numbers<[1], [0], [0], [1], [0, 0, 1, 1], [], []>} : vector<32x64xf32>, vector<64x16xf32>, vector<32x16xf32> -> vector<32x16xf32>
    %c0_21 = arith.constant 0 : index
    %c32 = arith.constant 32 : index
    %28 = vector.load %arg7[%c0_21, %c32] : memref<32x256xf32, #tpu.memory_space<vmem>>, vector<32x16xf32>
    tpu.vector_store %arg7[%c0_21, %c32], %27 {strides = array<i32>} : memref<32x256xf32, #tpu.memory_space<vmem>>, vector<32x16xf32>,
    %c0_22 = arith.constant 0 : index
    %c0_23 = arith.constant 0 : index
    %c192 = arith.constant 192 : index
    %29 = vector.load %arg2[%c0_22, %c0_23, %c192] : memref<1x32x1024xf32, #tpu.memory_space<vmem>>, vector<1x32x64xf32>
    %30 = vector.shape_cast %29 : vector<1x32x64xf32> to vector<32x64xf32>
    %31 = arith.mulf %30, %1 : vector<32x64xf32>
    %32 = arith.addf %31, %3 : vector<32x64xf32>
    %cst_24 = arith.constant 0.000000e+00 : f32
    %33 = vector.broadcast %cst_24 : f32 to vector<32x64xf32>
    %34 = arith.maximumf %32, %33 : vector<32x64xf32>
    %cst_25 = arith.constant dense<0.000000e+00> : vector<32x16xf32>
    %35 = tpu.matmul %34, %4, %cst_25 {dimension_numbers = #tpu.dot_dimension_numbers<[1], [0], [0], [1], [0, 0, 1, 1], [], []>} : vector<32x64xf32>, vector<64x16xf32>, vector<32x16xf32> -> vector<32x16xf32>
    %c0_26 = arith.constant 0 : index
    %c48 = arith.constant 48 : index
    %36 = vector.load %arg7[%c0_26, %c48] : memref<32x256xf32, #tpu.memory_space<vmem>>, vector<32x16xf32>
    tpu.vector_store %arg7[%c0_26, %c48], %35 {strides = array<i32>} : memref<32x256xf32, #tpu.memory_space<vmem>>, vector<32x16xf32>,
    %c0_27 = arith.constant 0 : index
    %c0_28 = arith.constant 0 : index
    %c256 = arith.constant 256 : index
    %37 = vector.load %arg2[%c0_27, %c0_28, %c256] : memref<1x32x1024xf32, #tpu.memory_space<vmem>>, vector<1x32x64xf32>
    %38 = vector.shape_cast %37 : vector<1x32x64xf32> to vector<32x64xf32>
    %39 = arith.mulf %38, %1 : vector<32x64xf32>
    %40 = arith.addf %39, %3 : vector<32x64xf32>
    %cst_29 = arith.constant 0.000000e+00 : f32
    %41 = vector.broadcast %cst_29 : f32 to vector<32x64xf32>
    %42 = arith.maximumf %40, %41 : vector<32x64xf32>
    %cst_30 = arith.constant dense<0.000000e+00> : vector<32x16xf32>
    %43 = tpu.matmul %42, %4, %cst_30 {dimension_numbers = #tpu.dot_dimension_numbers<[1], [0], [0], [1], [0, 0, 1, 1], [], []>} : vector<32x64xf32>, vector<64x16xf32>, vector<32x16xf32> -> vector<32x16xf32>
    %c0_31 = arith.constant 0 : index
    %c64_32 = arith.constant 64 : index
    %44 = vector.load %arg7[%c0_31, %c64_32] : memref<32x256xf32, #tpu.memory_space<vmem>>, vector<32x16xf32>
    tpu.vector_store %arg7[%c0_31, %c64_32], %43 {strides = array<i32>} : memref<32x256xf32, #tpu.memory_space<vmem>>, vector<32x16xf32>,
    %c0_33 = arith.constant 0 : index
    %c0_34 = arith.constant 0 : index
    %c320 = arith.constant 320 : index
    %45 = vector.load %arg2[%c0_33, %c0_34, %c320] : memref<1x32x1024xf32, #tpu.memory_space<vmem>>, vector<1x32x64xf32>
    %46 = vector.shape_cast %45 : vector<1x32x64xf32> to vector<32x64xf32>
    %47 = arith.mulf %46, %1 : vector<32x64xf32>
    %48 = arith.addf %47, %3 : vector<32x64xf32>
    %cst_35 = arith.constant 0.000000e+00 : f32
    %49 = vector.broadcast %cst_35 : f32 to vector<32x64xf32>
    %50 = arith.maximumf %48, %49 : vector<32x64xf32>
    %cst_36 = arith.constant dense<0.000000e+00> : vector<32x16xf32>
    %51 = tpu.matmul %50, %4, %cst_36 {dimension_numbers = #tpu.dot_dimension_numbers<[1], [0], [0], [1], [0, 0, 1, 1], [], []>} : vector<32x64xf32>, vector<64x16xf32>, vector<32x16xf32> -> vector<32x16xf32>
    %c0_37 = arith.constant 0 : index
    %c80 = arith.constant 80 : index
    %52 = vector.load %arg7[%c0_37, %c80] : memref<32x256xf32, #tpu.memory_space<vmem>>, vector<32x16xf32>
    tpu.vector_store %arg7[%c0_37, %c80], %51 {strides = array<i32>} : memref<32x256xf32, #tpu.memory_space<vmem>>, vector<32x16xf32>,
    %c0_38 = arith.constant 0 : index
    %c0_39 = arith.constant 0 : index
    %c384 = arith.constant 384 : index
    %53 = vector.load %arg2[%c0_38, %c0_39, %c384] : memref<1x32x1024xf32, #tpu.memory_space<vmem>>, vector<1x32x64xf32>
    %54 = vector.shape_cast %53 : vector<1x32x64xf32> to vector<32x64xf32>
    %55 = arith.mulf %54, %1 : vector<32x64xf32>
    %56 = arith.addf %55, %3 : vector<32x64xf32>
    %cst_40 = arith.constant 0.000000e+00 : f32
    %57 = vector.broadcast %cst_40 : f32 to vector<32x64xf32>
    %58 = arith.maximumf %56, %57 : vector<32x64xf32>
    %cst_41 = arith.constant dense<0.000000e+00> : vector<32x16xf32>
    %59 = tpu.matmul %58, %4, %cst_41 {dimension_numbers = #tpu.dot_dimension_numbers<[1], [0], [0], [1], [0, 0, 1, 1], [], []>} : vector<32x64xf32>, vector<64x16xf32>, vector<32x16xf32> -> vector<32x16xf32>
    %c0_42 = arith.constant 0 : index
    %c96 = arith.constant 96 : index
    %60 = vector.load %arg7[%c0_42, %c96] : memref<32x256xf32, #tpu.memory_space<vmem>>, vector<32x16xf32>
    tpu.vector_store %arg7[%c0_42, %c96], %59 {strides = array<i32>} : memref<32x256xf32, #tpu.memory_space<vmem>>, vector<32x16xf32>,
    %c0_43 = arith.constant 0 : index
    %c0_44 = arith.constant 0 : index
    %c448 = arith.constant 448 : index
    %61 = vector.load %arg2[%c0_43, %c0_44, %c448] : memref<1x32x1024xf32, #tpu.memory_space<vmem>>, vector<1x32x64xf32>
    %62 = vector.shape_cast %61 : vector<1x32x64xf32> to vector<32x64xf32>
    %63 = arith.mulf %62, %1 : vector<32x64xf32>
    %64 = arith.addf %63, %3 : vector<32x64xf32>
    %cst_45 = arith.constant 0.000000e+00 : f32
    %65 = vector.broadcast %cst_45 : f32 to vector<32x64xf32>
    %66 = arith.maximumf %64, %65 : vector<32x64xf32>
    %cst_46 = arith.constant dense<0.000000e+00> : vector<32x16xf32>
    %67 = tpu.matmul %66, %4, %cst_46 {dimension_numbers = #tpu.dot_dimension_numbers<[1], [0], [0], [1], [0, 0, 1, 1], [], []>} : vector<32x64xf32>, vector<64x16xf32>, vector<32x16xf32> -> vector<32x16xf32>
    %c0_47 = arith.constant 0 : index
    %c112 = arith.constant 112 : index
    %68 = vector.load %arg7[%c0_47, %c112] : memref<32x256xf32, #tpu.memory_space<vmem>>, vector<32x16xf32>
    tpu.vector_store %arg7[%c0_47, %c112], %67 {strides = array<i32>} : memref<32x256xf32, #tpu.memory_space<vmem>>, vector<32x16xf32>,
    %c0_48 = arith.constant 0 : index
    %c0_49 = arith.constant 0 : index
    %c512 = arith.constant 512 : index
    %69 = vector.load %arg2[%c0_48, %c0_49, %c512] : memref<1x32x1024xf32, #tpu.memory_space<vmem>>, vector<1x32x64xf32>
    %70 = vector.shape_cast %69 : vector<1x32x64xf32> to vector<32x64xf32>
    %71 = arith.mulf %70, %1 : vector<32x64xf32>
    %72 = arith.addf %71, %3 : vector<32x64xf32>
    %cst_50 = arith.constant 0.000000e+00 : f32
    %73 = vector.broadcast %cst_50 : f32 to vector<32x64xf32>
    %74 = arith.maximumf %72, %73 : vector<32x64xf32>
    %cst_51 = arith.constant dense<0.000000e+00> : vector<32x16xf32>
    %75 = tpu.matmul %74, %4, %cst_51 {dimension_numbers = #tpu.dot_dimension_numbers<[1], [0], [0], [1], [0, 0, 1, 1], [], []>} : vector<32x64xf32>, vector<64x16xf32>, vector<32x16xf32> -> vector<32x16xf32>
    %c0_52 = arith.constant 0 : index
    %c128_53 = arith.constant 128 : index
    %76 = vector.load %arg7[%c0_52, %c128_53] : memref<32x256xf32, #tpu.memory_space<vmem>>, vector<32x16xf32>
    tpu.vector_store %arg7[%c0_52, %c128_53], %75 {strides = array<i32>} : memref<32x256xf32, #tpu.memory_space<vmem>>, vector<32x16xf32>,
    %c0_54 = arith.constant 0 : index
    %c0_55 = arith.constant 0 : index
    %c576 = arith.constant 576 : index
    %77 = vector.load %arg2[%c0_54, %c0_55, %c576] : memref<1x32x1024xf32, #tpu.memory_space<vmem>>, vector<1x32x64xf32>
    %78 = vector.shape_cast %77 : vector<1x32x64xf32> to vector<32x64xf32>
    %79 = arith.mulf %78, %1 : vector<32x64xf32>
    %80 = arith.addf %79, %3 : vector<32x64xf32>
    %cst_56 = arith.constant 0.000000e+00 : f32
    %81 = vector.broadcast %cst_56 : f32 to vector<32x64xf32>
    %82 = arith.maximumf %80, %81 : vector<32x64xf32>
    %cst_57 = arith.constant dense<0.000000e+00> : vector<32x16xf32>
    %83 = tpu.matmul %82, %4, %cst_57 {dimension_numbers = #tpu.dot_dimension_numbers<[1], [0], [0], [1], [0, 0, 1, 1], [], []>} : vector<32x64xf32>, vector<64x16xf32>, vector<32x16xf32> -> vector<32x16xf32>
    %c0_58 = arith.constant 0 : index
    %c144 = arith.constant 144 : index
    %84 = vector.load %arg7[%c0_58, %c144] : memref<32x256xf32, #tpu.memory_space<vmem>>, vector<32x16xf32>
    tpu.vector_store %arg7[%c0_58, %c144], %83 {strides = array<i32>} : memref<32x256xf32, #tpu.memory_space<vmem>>, vector<32x16xf32>,
    %c0_59 = arith.constant 0 : index
    %c0_60 = arith.constant 0 : index
    %c640 = arith.constant 640 : index
    %85 = vector.load %arg2[%c0_59, %c0_60, %c640] : memref<1x32x1024xf32, #tpu.memory_space<vmem>>, vector<1x32x64xf32>
    %86 = vector.shape_cast %85 : vector<1x32x64xf32> to vector<32x64xf32>
    %87 = arith.mulf %86, %1 : vector<32x64xf32>
    %88 = arith.addf %87, %3 : vector<32x64xf32>
    %cst_61 = arith.constant 0.000000e+00 : f32
    %89 = vector.broadcast %cst_61 : f32 to vector<32x64xf32>
    %90 = arith.maximumf %88, %89 : vector<32x64xf32>
    %cst_62 = arith.constant dense<0.000000e+00> : vector<32x16xf32>
    %91 = tpu.matmul %90, %4, %cst_62 {dimension_numbers = #tpu.dot_dimension_numbers<[1], [0], [0], [1], [0, 0, 1, 1], [], []>} : vector<32x64xf32>, vector<64x16xf32>, vector<32x16xf32> -> vector<32x16xf32>
    %c0_63 = arith.constant 0 : index
    %c160 = arith.constant 160 : index
    %92 = vector.load %arg7[%c0_63, %c160] : memref<32x256xf32, #tpu.memory_space<vmem>>, vector<32x16xf32>
    tpu.vector_store %arg7[%c0_63, %c160], %91 {strides = array<i32>} : memref<32x256xf32, #tpu.memory_space<vmem>>, vector<32x16xf32>,
    %c0_64 = arith.constant 0 : index
    %c0_65 = arith.constant 0 : index
    %c704 = arith.constant 704 : index
    %93 = vector.load %arg2[%c0_64, %c0_65, %c704] : memref<1x32x1024xf32, #tpu.memory_space<vmem>>, vector<1x32x64xf32>
    %94 = vector.shape_cast %93 : vector<1x32x64xf32> to vector<32x64xf32>
    %95 = arith.mulf %94, %1 : vector<32x64xf32>
    %96 = arith.addf %95, %3 : vector<32x64xf32>
    %cst_66 = arith.constant 0.000000e+00 : f32
    %97 = vector.broadcast %cst_66 : f32 to vector<32x64xf32>
    %98 = arith.maximumf %96, %97 : vector<32x64xf32>
    %cst_67 = arith.constant dense<0.000000e+00> : vector<32x16xf32>
    %99 = tpu.matmul %98, %4, %cst_67 {dimension_numbers = #tpu.dot_dimension_numbers<[1], [0], [0], [1], [0, 0, 1, 1], [], []>} : vector<32x64xf32>, vector<64x16xf32>, vector<32x16xf32> -> vector<32x16xf32>
    %c0_68 = arith.constant 0 : index
    %c176 = arith.constant 176 : index
    %100 = vector.load %arg7[%c0_68, %c176] : memref<32x256xf32, #tpu.memory_space<vmem>>, vector<32x16xf32>
    tpu.vector_store %arg7[%c0_68, %c176], %99 {strides = array<i32>} : memref<32x256xf32, #tpu.memory_space<vmem>>, vector<32x16xf32>,
    %c0_69 = arith.constant 0 : index
    %c0_70 = arith.constant 0 : index
    %c768 = arith.constant 768 : index
    %101 = vector.load %arg2[%c0_69, %c0_70, %c768] : memref<1x32x1024xf32, #tpu.memory_space<vmem>>, vector<1x32x64xf32>
    %102 = vector.shape_cast %101 : vector<1x32x64xf32> to vector<32x64xf32>
    %103 = arith.mulf %102, %1 : vector<32x64xf32>
    %104 = arith.addf %103, %3 : vector<32x64xf32>
    %cst_71 = arith.constant 0.000000e+00 : f32
    %105 = vector.broadcast %cst_71 : f32 to vector<32x64xf32>
    %106 = arith.maximumf %104, %105 : vector<32x64xf32>
    %cst_72 = arith.constant dense<0.000000e+00> : vector<32x16xf32>
    %107 = tpu.matmul %106, %4, %cst_72 {dimension_numbers = #tpu.dot_dimension_numbers<[1], [0], [0], [1], [0, 0, 1, 1], [], []>} : vector<32x64xf32>, vector<64x16xf32>, vector<32x16xf32> -> vector<32x16xf32>
    %c0_73 = arith.constant 0 : index
    %c192_74 = arith.constant 192 : index
    %108 = vector.load %arg7[%c0_73, %c192_74] : memref<32x256xf32, #tpu.memory_space<vmem>>, vector<32x16xf32>
    tpu.vector_store %arg7[%c0_73, %c192_74], %107 {strides = array<i32>} : memref<32x256xf32, #tpu.memory_space<vmem>>, vector<32x16xf32>,
    %c0_75 = arith.constant 0 : index
    %c0_76 = arith.constant 0 : index
    %c832 = arith.constant 832 : index
    %109 = vector.load %arg2[%c0_75, %c0_76, %c832] : memref<1x32x1024xf32, #tpu.memory_space<vmem>>, vector<1x32x64xf32>
    %110 = vector.shape_cast %109 : vector<1x32x64xf32> to vector<32x64xf32>
    %111 = arith.mulf %110, %1 : vector<32x64xf32>
    %112 = arith.addf %111, %3 : vector<32x64xf32>
    %cst_77 = arith.constant 0.000000e+00 : f32
    %113 = vector.broadcast %cst_77 : f32 to vector<32x64xf32>
    %114 = arith.maximumf %112, %113 : vector<32x64xf32>
    %cst_78 = arith.constant dense<0.000000e+00> : vector<32x16xf32>
    %115 = tpu.matmul %114, %4, %cst_78 {dimension_numbers = #tpu.dot_dimension_numbers<[1], [0], [0], [1], [0, 0, 1, 1], [], []>} : vector<32x64xf32>, vector<64x16xf32>, vector<32x16xf32> -> vector<32x16xf32>
    %c0_79 = arith.constant 0 : index
    %c208 = arith.constant 208 : index
    %116 = vector.load %arg7[%c0_79, %c208] : memref<32x256xf32, #tpu.memory_space<vmem>>, vector<32x16xf32>
    tpu.vector_store %arg7[%c0_79, %c208], %115 {strides = array<i32>} : memref<32x256xf32, #tpu.memory_space<vmem>>, vector<32x16xf32>,
    %c0_80 = arith.constant 0 : index
    %c0_81 = arith.constant 0 : index
    %c896 = arith.constant 896 : index
    %117 = vector.load %arg2[%c0_80, %c0_81, %c896] : memref<1x32x1024xf32, #tpu.memory_space<vmem>>, vector<1x32x64xf32>
    %118 = vector.shape_cast %117 : vector<1x32x64xf32> to vector<32x64xf32>
    %119 = arith.mulf %118, %1 : vector<32x64xf32>
    %120 = arith.addf %119, %3 : vector<32x64xf32>
    %cst_82 = arith.constant 0.000000e+00 : f32
    %121 = vector.broadcast %cst_82 : f32 to vector<32x64xf32>
    %122 = arith.maximumf %120, %121 : vector<32x64xf32>
    %cst_83 = arith.constant dense<0.000000e+00> : vector<32x16xf32>
    %123 = tpu.matmul %122, %4, %cst_83 {dimension_numbers = #tpu.dot_dimension_numbers<[1], [0], [0], [1], [0, 0, 1, 1], [], []>} : vector<32x64xf32>, vector<64x16xf32>, vector<32x16xf32> -> vector<32x16xf32>
    %c0_84 = arith.constant 0 : index
    %c224 = arith.constant 224 : index
    %124 = vector.load %arg7[%c0_84, %c224] : memref<32x256xf32, #tpu.memory_space<vmem>>, vector<32x16xf32>
    tpu.vector_store %arg7[%c0_84, %c224], %123 {strides = array<i32>} : memref<32x256xf32, #tpu.memory_space<vmem>>, vector<32x16xf32>,
    %c0_85 = arith.constant 0 : index
    %c0_86 = arith.constant 0 : index
    %c960 = arith.constant 960 : index
    %125 = vector.load %arg2[%c0_85, %c0_86, %c960] : memref<1x32x1024xf32, #tpu.memory_space<vmem>>, vector<1x32x64xf32>
    %126 = vector.shape_cast %125 : vector<1x32x64xf32> to vector<32x64xf32>
    %127 = arith.mulf %126, %1 : vector<32x64xf32>
    %128 = arith.addf %127, %3 : vector<32x64xf32>
    %cst_87 = arith.constant 0.000000e+00 : f32
    %129 = vector.broadcast %cst_87 : f32 to vector<32x64xf32>
    %130 = arith.maximumf %128, %129 : vector<32x64xf32>
    %cst_88 = arith.constant dense<0.000000e+00> : vector<32x16xf32>
    %131 = tpu.matmul %130, %4, %cst_88 {dimension_numbers = #tpu.dot_dimension_numbers<[1], [0], [0], [1], [0, 0, 1, 1], [], []>} : vector<32x64xf32>, vector<64x16xf32>, vector<32x16xf32> -> vector<32x16xf32>
    %c0_89 = arith.constant 0 : index
    %c240 = arith.constant 240 : index
    %132 = vector.load %arg7[%c0_89, %c240] : memref<32x256xf32, #tpu.memory_space<vmem>>, vector<32x16xf32>
    tpu.vector_store %arg7[%c0_89, %c240], %131 {strides = array<i32>} : memref<32x256xf32, #tpu.memory_space<vmem>>, vector<32x16xf32>,
    %c0_90 = arith.constant 0 : index
    %c0_91 = arith.constant 0 : index
    %133 = vector.load %arg5[%c0_90, %c0_91] : memref<16x32xf32, #tpu.memory_space<vmem>>, vector<16x32xf32>
    %c0_92 = arith.constant 0 : index
    %c0_93 = arith.constant 0 : index
    %134 = vector.load %arg7[%c0_92, %c0_93] : memref<32x256xf32, #tpu.memory_space<vmem>>, vector<32x256xf32>
    %cst_94 = arith.constant dense<0.000000e+00> : vector<16x256xf32>
    %135 = tpu.matmul %133, %134, %cst_94 {dimension_numbers = #tpu.dot_dimension_numbers<[1], [0], [0], [1], [0, 0, 1, 1], [], []>} : vector<16x32xf32>, vector<32x256xf32>, vector<16x256xf32> -> vector<16x256xf32>
    %c0_95 = arith.constant 0 : index
    %c0_96 = arith.constant 0 : index
    %c0_97 = arith.constant 0 : index
    %136 = vector.load %arg6[%c0_95, %c0_96, %c0_97] : memref<1x16x256xf32, #tpu.memory_space<vmem>>, vector<1x16x256xf32>
    %137 = vector.shape_cast %136 : vector<1x16x256xf32> to vector<16x256xf32>
    %138 = vector.shape_cast %135 : vector<16x256xf32> to vector<1x16x256xf32>
    tpu.vector_store %arg6[%c0_95, %c0_96, %c0_97], %138 {strides = array<i32>} : memref<1x16x256xf32, #tpu.memory_space<vmem>>, vector<1x16x256xf32>,
    return
  }
  func.func @transform_0(%arg0: i32, %arg1: i32) -> (i32, i32, i32) {
    %c0_i32 = arith.constant 0 : i32
    %c0_i32_0 = arith.constant 0 : i32
    return %arg0, %c0_i32, %arg1 : i32, i32, i32
  }
  func.func @transform_1(%arg0: i32, %arg1: i32) -> (i32, i32, i32) {
    %c0_i32 = arith.constant 0 : i32
    %c0_i32_0 = arith.constant 0 : i32
    %c0_i32_1 = arith.constant 0 : i32
    %c0_i32_2 = arith.constant 0 : i32
    return %c0_i32, %c0_i32_0, %c0_i32_1 : i32, i32, i32
  }
  func.func @transform_2(%arg0: i32, %arg1: i32) -> (i32, i32) {
    %c0_i32 = arith.constant 0 : i32
    %c0_i32_0 = arith.constant 0 : i32
    %c0_i32_1 = arith.constant 0 : i32
    return %c0_i32, %c0_i32_0 : i32, i32
  }
  func.func @transform_3(%arg0: i32, %arg1: i32) -> (i32, i32) {
    %c0_i32 = arith.constant 0 : i32
    %c0_i32_0 = arith.constant 0 : i32
    %c0_i32_1 = arith.constant 0 : i32
    return %c0_i32, %c0_i32_0 : i32, i32
  }
  func.func @transform_4(%arg0: i32, %arg1: i32) -> (i32, i32, i32) {
    %c0_i32 = arith.constant 0 : i32
    %c0_i32_0 = arith.constant 0 : i32
    return %arg0, %c0_i32, %arg1 : i32, i32, i32
  }
}

</mosaic_0001>

<llo_original>
// kernel: transition_forward.1
$region0: #{transition_forward.1}
  #allocation0 [shape = 'u32[]', space=smem, size = 0x4, offset = 0x4, fixed_abs, tag = 'smem constant byte address 0x4 - core index']
  #allocation1 [shape = 'u32[144,128]{1,0:T(1,128)}', space=vmem, size = 0x12000, scoped, tag = 'internal scratch']
  #allocation2 [shape = 'f32[32,256]{1,0:T(8,128)}', space=vmem, size = 0x8000, scoped, tag = 'scratch operand']
  %s0 = inlined_call_operand.vmem [shape: f32[2,32,1024], index: 0, kind: input, shape index: {}]
  %s1 = inlined_call_operand.vmem [shape: f32[2,32,64], index: 1, kind: input, shape index: {}]
  %s2 = inlined_call_operand.vmem [shape: f32[64,16], index: 2, kind: input, shape index: {}]
  %s3 = inlined_call_operand.vmem [shape: f32[16,32], index: 3, kind: input, shape index: {}]
  %s4 = inlined_call_operand.vmem [shape: f32[2,16,256], index: 4, kind: output, shape index: {}]
  %s5 = sld [smem:[#allocation0]]
  $region49: #{transition_forward.1} parent=0
    _
  %s7 = ssub.s32 1, %s5
  %s8 = scalar_select 0, %s7, %s5
  loop: start=0, step=1, limit=4
  $region2: #{transition_forward.1} parent=0 // loop_pre_header
    _
  $region3: #{transition_forward.1} parent=0 // loop_header
    %s10 = sphi 0, %s14
    %p11 = scmp.ge.s32.totalorder %s10, 4
    %s17 = sphi 0, %s29
    %s18 = sphi 0, %s25
    %s19 = sphi 0, %s17
    %s20 = sphi 0, %s18
    %s21 = sphi 0, %s19
    %s22 = sphi 0, %s20
    %s34 = sphi 0, %s36
    %s37 = sphi 0, %s34
    %s38 = sphi 0, %s37
    %s54 = sphi 0, %s38
    %s58 = sphi 0, %s58
    %s60 = sphi 0, %s58
    %s61 = sphi 0, %s60
    %s75 = sphi 0, %s61
    %s79 = sphi 0, %s79
    %s81 = sphi 0, %s79
    %s82 = sphi 0, %s81
    %s96 = sphi 0, %s82
    %s100 = sphi 0, %s100
    %s102 = sphi 0, %s100
    %s103 = sphi 0, %s102
    %s117 = sphi 0, %s103
    %s125 = sphi 0, %s127
    %s128 = sphi 0, %s125
    %s129 = sphi 0, %s128
    %s145 = sphi 0, %s129
  $region4: #{transition_forward.1} parent=0 // loop_header_branch
    %13 = sbr.rel (%p11) target = $region8
  $region5: #{transition_forward.1} parent=0 // loop_body
    %s15 = ssub.s32 %s10, 1
    %s16 = ssub.s32 %s10, 2
    %s23 = sadd.s32 1, %s18
    %p24 = scmp.ge.s32.totalorder %s23, 1
    %s25 = scalar_select %p24, 0, %s23
    %s26 = sadd.s32 1, %s17
    %s27 = scalar_select %p24, %s26, %s17
    %p28 = scmp.ge.s32.totalorder %s27, 2
    %s29 = scalar_select %p28, 0, %s27
    %s30 = ssub.s32 %s17, %s29
    %s31 = ssub.s32 %s18, %s25
    %s32 = sor.u32 %s30, %s31
    %p33 = scmp.eq.s32.totalorder %s32, 0
    %s35 = sadd.s32 %s34, 1
    %s36 = scalar_select %p33, %s34, %s35
    %p39 = pneg %p33
    %p40 = scmp.eq.s32.totalorder %s10, 1
    %p41 = por %p39, %p40
    %p42 = scmp.ne.s32.totalorder %s34, %s37
    %p43 = scmp.eq.s32.totalorder %s10, 0
    %p44 = por %p42, %p43
    %p45 = scmp.ne.s32.totalorder %s34, %s37
    %p46 = scmp.eq.s32.totalorder %s15, 1
    %p47 = por %p45, %p46
    %p48 = scmp.ne.s32.totalorder %s37, %s38
    %p49 = scmp.eq.s32.totalorder %s15, 0
    %p50 = por %p48, %p49
    %p51 = scmp.ne.s32.totalorder %s37, %s38
    %p52 = scmp.eq.s32.totalorder %s16, 1
    %p53 = por %p51, %p52
    %p55 = scmp.ne.s32.totalorder %s38, %s54
    %p56 = scmp.eq.s32.totalorder %s16, 0
    %p57 = por %p55, %p56
    %s59 = sadd.s32 %s58, 1
    %p62 = scmp.eq.s32.totalorder %s10, 1
    %p63 = scmp.ne.s32.totalorder %s58, %s60
    %p64 = scmp.eq.s32.totalorder %s10, 0
    %p65 = por %p63, %p64
    %p66 = scmp.ne.s32.totalorder %s58, %s60
    %p67 = scmp.eq.s32.totalorder %s15, 1
    %p68 = por %p66, %p67
    %p69 = scmp.ne.s32.totalorder %s60, %s61
    %p70 = scmp.eq.s32.totalorder %s15, 0
    %p71 = por %p69, %p70
    %p72 = scmp.ne.s32.totalorder %s60, %s61
    %p73 = scmp.eq.s32.totalorder %s16, 1
    %p74 = por %p72, %p73
    %p76 = scmp.ne.s32.totalorder %s61, %s75
    %p77 = scmp.eq.s32.totalorder %s16, 0
    %p78 = por %p76, %p77
    %s80 = sadd.s32 %s79, 1
    %p83 = scmp.eq.s32.totalorder %s10, 1
    %p84 = scmp.ne.s32.totalorder %s79, %s81
    %p85 = scmp.eq.s32.totalorder %s10, 0
    %p86 = por %p84, %p85
    %p87 = scmp.ne.s32.totalorder %s79, %s81
    %p88 = scmp.eq.s32.totalorder %s15, 1
    %p89 = por %p87, %p88
    %p90 = scmp.ne.s32.totalorder %s81, %s82
    %p91 = scmp.eq.s32.totalorder %s15, 0
    %p92 = por %p90, %p91
    %p93 = scmp.ne.s32.totalorder %s81, %s82
    %p94 = scmp.eq.s32.totalorder %s16, 1
    %p95 = por %p93, %p94
    %p97 = scmp.ne.s32.totalorder %s82, %s96
    %p98 = scmp.eq.s32.totalorder %s16, 0
    %p99 = por %p97, %p98
    %s101 = sadd.s32 %s100, 1
    %p104 = scmp.eq.s32.totalorder %s10, 1
    %p105 = scmp.ne.s32.totalorder %s100, %s102
    %p106 = scmp.eq.s32.totalorder %s10, 0
    %p107 = por %p105, %p106
    %p108 = scmp.ne.s32.totalorder %s100, %s102
    %p109 = scmp.eq.s32.totalorder %s15, 1
    %p110 = por %p108, %p109
    %p111 = scmp.ne.s32.totalorder %s102, %s103
    %p112 = scmp.eq.s32.totalorder %s15, 0
    %p113 = por %p111, %p112
    %p114 = scmp.ne.s32.totalorder %s102, %s103
    %p115 = scmp.eq.s32.totalorder %s16, 1
    %p116 = por %p114, %p115
    %p118 = scmp.ne.s32.totalorder %s103, %s117
    %p119 = scmp.eq.s32.totalorder %s16, 0
    %p120 = por %p118, %p119
    %s121 = ssub.s32 %s17, %s29
    %s122 = ssub.s32 %s18, %s25
    %s123 = sor.u32 %s121, %s122
    %p124 = scmp.eq.s32.totalorder %s123, 0
    %s126 = sadd.s32 %s125, 1
    %s127 = scalar_select %p124, %s125, %s126
    %p130 = pneg %p124
    %p131 = scmp.eq.s32.totalorder %s10, 1
    %p132 = por %p130, %p131
    %p133 = scmp.ne.s32.totalorder %s125, %s128
    %p134 = scmp.eq.s32.totalorder %s10, 0
    %p135 = por %p133, %p134
    %p136 = scmp.ne.s32.totalorder %s125, %s128
    %p137 = scmp.eq.s32.totalorder %s15, 1
    %p138 = por %p136, %p137
    %p139 = scmp.ne.s32.totalorder %s128, %s129
    %p140 = scmp.eq.s32.totalorder %s15, 0
    %p141 = por %p139, %p140
    %p142 = scmp.ne.s32.totalorder %s128, %s129
    %p143 = scmp.eq.s32.totalorder %s16, 1
    %p144 = por %p142, %p143
    %p146 = scmp.ne.s32.totalorder %s129, %s145
    %p147 = scmp.eq.s32.totalorder %s16, 0
    %p148 = por %p146, %p147
    %p149 = scmp.le.s32.totalorder 1, %s10
    %p150 = scmp.lt.s32.totalorder %s10, 3
    %p151 = pnand %p149, %p150
    %p152 = pneg %p151
    // Predicated region
    $region9: #{transition_forward.1} parent=5 // pred_check
      _
    $region10: #{transition_forward.1} parent=5 // pred_check_branch
      %154 = sbr.rel (%p151) target = $region12
    $region11: #{transition_forward.1} parent=5 // pred_region
      %s155 = ssub.s32 %s10, 1
      // Predicated region
      $region13: #{transition_forward.1} parent=11 // pred_check
        %p156 = pneg %p71
      $region14: #{transition_forward.1} parent=11 // pred_check_branch
        %158 = sbr.rel (%p156) target = $region16
      $region15: #{transition_forward.1} parent=11 // pred_region
        _
      $region16: #{transition_forward.1} parent=11 // pred_fallthru
        _
      // Predicated region
      $region17: #{transition_forward.1} parent=11 // pred_check
        %p159 = pneg %p92
      $region18: #{transition_forward.1} parent=11 // pred_check_branch
        %161 = sbr.rel (%p159) target = $region20
      $region19: #{transition_forward.1} parent=11 // pred_region
        _
      $region20: #{transition_forward.1} parent=11 // pred_fallthru
        _
      // Predicated region
      $region21: #{transition_forward.1} parent=11 // pred_check
        %p162 = pneg %p113
      $region22: #{transition_forward.1} parent=11 // pred_check_branch
        %164 = sbr.rel (%p162) target = $region24
      $region23: #{transition_forward.1} parent=11 // pred_region
        _
      $region24: #{transition_forward.1} parent=11 // pred_fallthru
        _
    $region12: #{transition_forward.1} parent=5 // pred_fallthru
      _
    %p165 = scmp.lt.s32.totalorder %s10, 2
    // Predicated region
    $region25: #{transition_forward.1} parent=5 // pred_check
      %p166 = pneg %p165
    $region26: #{transition_forward.1} parent=5 // pred_check_branch
      %168 = sbr.rel (%p166) target = $region28
    $region27: #{transition_forward.1} parent=5 // pred_region
      // Predicated region
      $region29: #{transition_forward.1} parent=27 // pred_check
        %p169 = pneg %p44
      $region30: #{transition_forward.1} parent=27 // pred_check_branch
        %171 = sbr.rel (%p169) target = $region32
      $region31: #{transition_forward.1} parent=27 // pred_region
        %s172 = smul.u32 8, %s18
        %p173 = scmp.lt.s32.totalorder %s17, 1
        %s174 = scalar_select %p173, %s17, 1
        %p175 = scmp.lt.s32.totalorder %s172, 7
        %s176 = scalar_select %p175, %s172, 7
        %s177 = smul.addr %s174, 32
        %s178 = sadd.s32 %s176, %s177
        %s179 = smul.addr %s178, 8
        %s180 = scalar_lea.vmem %s0, %s179
        %s181 = smul.u32 8, %s18
      $region32: #{transition_forward.1} parent=27 // pred_fallthru
        _
    $region28: #{transition_forward.1} parent=5 // pred_fallthru
      _
    %p182 = scmp.le.s32.totalorder 1, %s10
    %p183 = scmp.lt.s32.totalorder %s10, 3
    %p184 = pnand %p182, %p183
    %p185 = pneg %p184
    // Predicated region
    $region33: #{transition_forward.1} parent=5 // pred_check
      _
    $region34: #{transition_forward.1} parent=5 // pred_check_branch
      %187 = sbr.rel (%p184) target = $region36
    $region35: #{transition_forward.1} parent=5 // pred_region
      %s188 = ssub.s32 %s10, 1
      %s189 = smul.u32 8, %s20
      %p190 = scmp.lt.s32.totalorder %s19, 1
      %s191 = scalar_select %p190, %s19, 1
      %p192 = scmp.lt.s32.totalorder %s189, 7
      %s193 = scalar_select %p192, %s189, 7
      %s194 = smul.addr %s191, 32
      %s195 = sadd.s32 %s193, %s194
      %s196 = smul.addr %s195, 8
      %s197 = scalar_lea.vmem %s0, %s196
      %p198 = pneg %p50
      %p199 = pneg %p47
      %p200 = pneg %p71
      %p201 = pneg %p68
      %p202 = pneg %p92
      %p203 = pneg %p89
      %p204 = pneg %p113
      %p205 = pneg %p110
      %p206 = pneg %p141
      %p207 = pneg %p138
      %s208 = smul.u32 2, %s20
      %p209 = scmp.lt.s32.totalorder %s19, 1
      %s210 = scalar_select %p209, %s19, 1
      %p211 = scmp.lt.s32.totalorder %s208, 1
      %s212 = scalar_select %p211, %s208, 1
      %s213 = smul.addr %s210, 4
      %s214 = sadd.s32 %s212, %s213
      %s215 = smul.addr %s214, 8
      %s216 = scalar_lea.vmem %s4, %s215
      %s217 = smul.u32 8, %s20
      %p218 = scmp.lt.s32.totalorder %s19, 1
      %s219 = scalar_select %p218, %s19, 1
      %p220 = scmp.lt.s32.totalorder %s217, 7
      %s221 = scalar_select %p220, %s217, 7
      %s222 = smul.addr %s219, 32
      %s223 = sadd.s32 %s221, %s222
      %s224 = smul.addr %s223, 8
      %s225 = scalar_lea.vmem %s0, %s224
      %s226 = smul.u32 8, %s20
      %s227 = smul.u32 2, %s20
      %p228 = scmp.lt.s32.totalorder %s19, 1
      %s229 = scalar_select %p228, %s19, 1
      %p230 = scmp.lt.s32.totalorder %s227, 1
      %s231 = scalar_select %p230, %s227, 1
      %s232 = smul.addr %s229, 4
      %s233 = sadd.s32 %s231, %s232
      %s234 = smul.addr %s233, 8
      %s235 = scalar_lea.vmem %s4, %s234
      %s236 = smul.u32 2, %s20
      %v237 = vld [vmem:[%s1] sm:$0xff]
      %v238 = vld [vmem:[%s1 + $0x8] sm:$0xff]
      %v239 = vld [vmem:[%s1 + $0x10] sm:$0xff]
      %v240 = vld [vmem:[%s1 + $0x18] sm:$0xff]
      %s241 = scalar_lea.vmem %s1, 32
      %v242 = vld [vmem:[%s241] sm:$0xff]
      %v243 = vld [vmem:[%s241 + $0x8] sm:$0xff]
      %v244 = vld [vmem:[%s241 + $0x10] sm:$0xff]
      %v245 = vld [vmem:[%s241 + $0x18] sm:$0xff]
      %v246 = vld [vmem:[%s2] sm:$0xff]
      %v247 = vld [vmem:[%s2 + $0x8] sm:$0xff]
      %v248 = vld [vmem:[%s2 + $0x10] sm:$0xff]
      %v249 = vld [vmem:[%s2 + $0x18] sm:$0xff]
      %v250 = vld [vmem:[%s2 + $0x20] sm:$0xff]
      %v251 = vld [vmem:[%s2 + $0x28] sm:$0xff]
      %v252 = vld [vmem:[%s2 + $0x30] sm:$0xff]
      %v253 = vld [vmem:[%s2 + $0x38] sm:$0xff]
      %v254 = vld [vmem:[%s225] sm:$0xff]
      %v255 = vld [vmem:[%s225 + $0x40] sm:$0xff]
      %v256 = vld [vmem:[%s225 + $0x80] sm:$0xff]
      %v257 = vld [vmem:[%s225 + $0xc0] sm:$0xff]
      %v258 = vmul.f32 %v254, %v237
      %v259 = vmul.f32 %v255, %v238
      %v260 = vmul.f32 %v256, %v239
      %v261 = vmul.f32 %v257, %v240
      %v262 = vadd.f32 %v258, %v242
      %v263 = vadd.f32 %v259, %v243
      %v264 = vadd.f32 %v260, %v244
      %v265 = vadd.f32 %v261, %v245
      %v266 = vmax.f32 %v262, 0.0
      %v267 = vmax.f32 %v263, 0.0
      %v268 = vmax.f32 %v264, 0.0
      %v269 = vmax.f32 %v265, 0.0
      %vm270 = vcmask 523264
      %v272 = vsel %vm270, %v266, 0
      %v275 = vsel %vm270, %v267, 0
      %v278 = vsel %vm270, %v268, 0
      %v281 = vsel %vm270, %v269, 0
      %283 = vmatprep.subr.mxu0 0.0
      %284 = vmatpush1.msra.mxu0 %v246
      %285 = vmatprep.subr.mxu0 0.0
      %286 = vmatpush1.msra.mxu0 %v247
      %287 = vmatprep.subr.mxu0 0.0
      %288 = vmatpush1.msra.mxu0 %v248
      %289 = vmatprep.subr.mxu0 0.0
      %290 = vmatpush1.msra.mxu0 %v249
      %291 = vmatprep.subr.mxu0 0.0
      %292 = vmatpush1.msra.mxu0 %v250
      %293 = vmatprep.subr.mxu0 0.0
      %294 = vmatpush1.msra.mxu0 %v251
      %295 = vmatprep.subr.mxu0 0.0
      %296 = vmatpush1.msra.mxu0 %v252
      %297 = vmatprep.subr.mxu0 0.0
      %298 = vmatpush1.msra.mxu0 %v253
      %299 = vmatprep.subr.mxu0 0.0
      %300 = vmatpush1.msra.mxu0 0.0
      %301 = vmatprep.subr.mxu0 0.0
      %302 = vmatpush1.msra.mxu0 0.0
      %303 = vmatprep.subr.mxu0 0.0
      %304 = vmatpush1.msra.mxu0 0.0
      %305 = vmatprep.subr.mxu0 0.0
      %306 = vmatpush1.msra.mxu0 0.0
      %307 = vmatprep.subr.mxu0 0.0
      %308 = vmatpush1.msra.mxu0 0.0
      %309 = vmatprep.subr.mxu0 0.0
      %310 = vmatpush1.msra.mxu0 0.0
      %311 = vmatprep.subr.mxu0 0.0
      %312 = vmatpush1.msra.mxu0 0.0
      %313 = vmatprep.subr.mxu0 0.0
      %314 = vmatpush1.msra.mxu0 0.0
      %315 = vmatprep.subr.mxu0 0.0
      %316 = vmatpush1.msra.mxu0 0.0
      %317 = vmatprep.subr.mxu0 0.0
      %318 = vmatpush1.msra.mxu0 0.0
      %319 = vmatprep.subr.mxu0 0.0
      %320 = vmatpush1.msra.mxu0 0.0
      %321 = vmatprep.subr.mxu0 0.0
      %322 = vmatpush1.msra.mxu0 0.0
      %323 = vmatprep.subr.mxu0 0.0
      %324 = vmatpush1.msra.mxu0 0.0
      %325 = vmatprep.subr.mxu0 0.0
      %326 = vmatpush1.msra.mxu0 0.0
      %327 = vmatprep.subr.mxu0 0.0
      %328 = vmatpush1.msra.mxu0 0.0
      %329 = vmatprep.subr.mxu0 0.0
      %330 = vmatpush1.msra.mxu0 0.0
      %331 = vmatprep.subr.mxu0 0.0
      %332 = vmatpush1.msra.mxu0 0.0
      %333 = vmatprep.subr.mxu0 0.0
      %334 = vmatpush1.msra.mxu0 0.0
      %335 = vmatprep.subr.mxu0 0.0
      %336 = vmatpush1.msra.mxu0 0.0
      %337 = vmatprep.subr.mxu0 0.0
      %338 = vmatpush1.msra.mxu0 0.0
      %339 = vmatprep.subr.mxu0 0.0
      %340 = vmatpush1.msra.mxu0 0.0
      %341 = vmatprep.subr.mxu0 0.0
      %342 = vmatpush1.msra.mxu0 0.0
      %343 = vmatprep.subr.mxu0 0.0
      %344 = vmatpush1.msra.mxu0 0.0
      %345 = vmatprep.subr.mxu0 0.0
      %346 = vmatpush1.msra.mxu0 0.0
      %347 = vmatprep.mubr.f32.mxu0 0.0
      %348 = vmatmul.mubr.f32.gmra.mrb[0].mxu0 %v272
      %v349 = vpop.f32.mrb[0].mxu0
      %v350 = vadd.f32 0.0, %v349
      %v351 = vpop.f32.mrb[0].mxu0
      %352 = vmatprep.mubr.f32.mxu0 0.0
      %353 = vmatmul.mubr.f32.gmra.mrb[0].mxu0 %v275
      %v354 = vpop.f32.mrb[0].mxu0
      %v355 = vadd.f32 0.0, %v354
      %v356 = vpop.f32.mrb[0].mxu0
      %357 = vmatprep.mubr.f32.mxu0 0.0
      %358 = vmatmul.mubr.f32.gmra.mrb[0].mxu0 %v278
      %v359 = vpop.f32.mrb[0].mxu0
      %v360 = vadd.f32 0.0, %v359
      %v361 = vpop.f32.mrb[0].mxu0
      %362 = vmatprep.mubr.f32.mxu0 0.0
      %363 = vmatmul.mubr.f32.gmra.mrb[0].mxu0 %v281
      %v364 = vpop.f32.mrb[0].mxu0
      %v365 = vadd.f32 0.0, %v364
      %v366 = vpop.f32.mrb[0].mxu0
      %367 = vdwg.mxu0
      %vm368 = vcmask 130048
      %369 = vst.msk [vmem:[#allocation2] sm:$0xff] %vm368, %v350
      %370 = vst.msk [vmem:[#allocation2 + $0x10] sm:$0xff] %vm368, %v355
      %371 = vst.msk [vmem:[#allocation2 + $0x20] sm:$0xff] %vm368, %v360
      %372 = vst.msk [vmem:[#allocation2 + $0x30] sm:$0xff] %vm368, %v365
      %v373 = vld [vmem:[%s225] sm:$0xff]
      %v374 = vld [vmem:[%s225 + $0x40] sm:$0xff]
      %v375 = vld [vmem:[%s225 + $0x80] sm:$0xff]
      %v376 = vld [vmem:[%s225 + $0xc0] sm:$0xff]
      %381 = vrot.lane.b32.xlu0 %v237, 64
      %v382 = vpop.permute.xlu0 %381
      %383 = vrot.lane.b32.xlu0 %v238, 64
      %v384 = vpop.permute.xlu0 %383
      %385 = vrot.lane.b32.xlu0 %v239, 64
      %v386 = vpop.permute.xlu0 %385
      %387 = vrot.lane.b32.xlu0 %v240, 64
      %v388 = vpop.permute.xlu0 %387
      %v393 = vmul.f32 %v373, %v382
      %v394 = vmul.f32 %v374, %v384
      %v395 = vmul.f32 %v375, %v386
      %v396 = vmul.f32 %v376, %v388
      %401 = vrot.lane.b32.xlu0 %v242, 64
      %v402 = vpop.permute.xlu0 %401
      %403 = vrot.lane.b32.xlu0 %v243, 64
      %v404 = vpop.permute.xlu0 %403
      %405 = vrot.lane.b32.xlu0 %v244, 64
      %v406 = vpop.permute.xlu0 %405
      %407 = vrot.lane.b32.xlu0 %v245, 64
      %v408 = vpop.permute.xlu0 %407
      %v413 = vadd.f32 %v393, %v402
      %v414 = vadd.f32 %v394, %v404
      %v415 = vadd.f32 %v395, %v406
      %v416 = vadd.f32 %v396, %v408
      %v417 = vmax.f32 %v413, 0.0
      %v418 = vmax.f32 %v414, 0.0
      %v419 = vmax.f32 %v415, 0.0
      %v420 = vmax.f32 %v416, 0.0
      %425 = vrot.lane.b32.xlu0 %v417, 64
      %v426 = vpop.permute.xlu0 %425
      %427 = vrot.lane.b32.xlu0 %v418, 64
      %v428 = vpop.permute.xlu0 %427
      %429 = vrot.lane.b32.xlu0 %v419, 64
      %v430 = vpop.permute.xlu0 %429
      %431 = vrot.lane.b32.xlu0 %v420, 64
      %v432 = vpop.permute.xlu0 %431
      %v433 = vsel %vm270, %v426, 0
      %v435 = vsel %vm270, %v428, 0
      %v437 = vsel %vm270, %v430, 0
      %v439 = vsel %vm270, %v432, 0
      %441 = vmatprep.subr.mxu0 0.0
      %442 = vmatpush1.msra.mxu0 %v246
      %443 = vmatprep.subr.mxu0 0.0
      %444 = vmatpush1.msra.mxu0 %v247
      %445 = vmatprep.subr.mxu0 0.0
      %446 = vmatpush1.msra.mxu0 %v248
      %447 = vmatprep.subr.mxu0 0.0
      %448 = vmatpush1.msra.mxu0 %v249
      %449 = vmatprep.subr.mxu0 0.0
      %450 = vmatpush1.msra.mxu0 %v250
      %451 = vmatprep.subr.mxu0 0.0
      %452 = vmatpush1.msra.mxu0 %v251
      %453 = vmatprep.subr.mxu0 0.0
      %454 = vmatpush1.msra.mxu0 %v252
      %455 = vmatprep.subr.mxu0 0.0
      %456 = vmatpush1.msra.mxu0 %v253
      %457 = vmatprep.subr.mxu0 0.0
      %458 = vmatpush1.msra.mxu0 0.0
      %459 = vmatprep.subr.mxu0 0.0
      %460 = vmatpush1.msra.mxu0 0.0
      %461 = vmatprep.subr.mxu0 0.0
      %462 = vmatpush1.msra.mxu0 0.0
      %463 = vmatprep.subr.mxu0 0.0
      %464 = vmatpush1.msra.mxu0 0.0
      %465 = vmatprep.subr.mxu0 0.0
      %466 = vmatpush1.msra.mxu0 0.0
      %467 = vmatprep.subr.mxu0 0.0
      %468 = vmatpush1.msra.mxu0 0.0
      %469 = vmatprep.subr.mxu0 0.0
      %470 = vmatpush1.msra.mxu0 0.0
      %471 = vmatprep.subr.mxu0 0.0
      %472 = vmatpush1.msra.mxu0 0.0
      %473 = vmatprep.subr.mxu0 0.0
      %474 = vmatpush1.msra.mxu0 0.0
      %475 = vmatprep.subr.mxu0 0.0
      %476 = vmatpush1.msra.mxu0 0.0
      %477 = vmatprep.subr.mxu0 0.0
      %478 = vmatpush1.msra.mxu0 0.0
      %479 = vmatprep.subr.mxu0 0.0
      %480 = vmatpush1.msra.mxu0 0.0
      %481 = vmatprep.subr.mxu0 0.0
      %482 = vmatpush1.msra.mxu0 0.0
      %483 = vmatprep.subr.mxu0 0.0
      %484 = vmatpush1.msra.mxu0 0.0
      %485 = vmatprep.subr.mxu0 0.0
      %486 = vmatpush1.msra.mxu0 0.0
      %487 = vmatprep.subr.mxu0 0.0
      %488 = vmatpush1.msra.mxu0 0.0
      %489 = vmatprep.subr.mxu0 0.0
      %490 = vmatpush1.msra.mxu0 0.0
      %491 = vmatprep.subr.mxu0 0.0
      %492 = vmatpush1.msra.mxu0 0.0
      %493 = vmatprep.subr.mxu0 0.0
      %494 = vmatpush1.msra.mxu0 0.0
      %495 = vmatprep.subr.mxu0 0.0
      %496 = vmatpush1.msra.mxu0 0.0
      %497 = vmatprep.subr.mxu0 0.0
      %498 = vmatpush1.msra.mxu0 0.0
      %499 = vmatprep.subr.mxu0 0.0
      %500 = vmatpush1.msra.mxu0 0.0
      %501 = vmatprep.subr.mxu0 0.0
      %502 = vmatpush1.msra.mxu0 0.0
      %503 = vmatprep.subr.mxu0 0.0
      %504 = vmatpush1.msra.mxu0 0.0
      %505 = vmatprep.mubr.f32.mxu0 0.0
      %506 = vmatmul.mubr.f32.gmra.mrb[0].mxu0 %v433
      %v507 = vpop.f32.mrb[0].mxu0
      %v508 = vadd.f32 0.0, %v507
      %v509 = vpop.f32.mrb[0].mxu0
      %510 = vmatprep.mubr.f32.mxu0 0.0
      %511 = vmatmul.mubr.f32.gmra.mrb[0].mxu0 %v435
      %v512 = vpop.f32.mrb[0].mxu0
      %v513 = vadd.f32 0.0, %v512
      %v514 = vpop.f32.mrb[0].mxu0
      %515 = vmatprep.mubr.f32.mxu0 0.0
      %516 = vmatmul.mubr.f32.gmra.mrb[0].mxu0 %v437
      %v517 = vpop.f32.mrb[0].mxu0
      %v518 = vadd.f32 0.0, %v517
      %v519 = vpop.f32.mrb[0].mxu0
      %520 = vmatprep.mubr.f32.mxu0 0.0
      %521 = vmatmul.mubr.f32.gmra.mrb[0].mxu0 %v439
      %v522 = vpop.f32.mrb[0].mxu0
      %v523 = vadd.f32 0.0, %v522
      %v524 = vpop.f32.mrb[0].mxu0
      %525 = vdwg.mxu0
      %530 = vrot.lane.b32.xlu0 %v508, 16
      %v531 = vpop.permute.xlu0 %530
      %532 = vrot.lane.b32.xlu0 %v513, 16
      %v533 = vpop.permute.xlu0 %532
      %534 = vrot.lane.b32.xlu0 %v518, 16
      %v535 = vpop.permute.xlu0 %534
      %536 = vrot.lane.b32.xlu0 %v523, 16
      %v537 = vpop.permute.xlu0 %536
      %vm542 = vcmask 261248
      %543 = vst.msk [vmem:[#allocation2] sm:$0xff] %vm542, %v531
      %544 = vst.msk [vmem:[#allocation2 + $0x10] sm:$0xff] %vm542, %v533
      %545 = vst.msk [vmem:[#allocation2 + $0x20] sm:$0xff] %vm542, %v535
      %546 = vst.msk [vmem:[#allocation2 + $0x30] sm:$0xff] %vm542, %v537
      %v547 = vld [vmem:[%s225 + $0x8] sm:$0xff]
      %v548 = vld [vmem:[%s225 + $0x48] sm:$0xff]
      %v549 = vld [vmem:[%s225 + $0x88] sm:$0xff]
      %v550 = vld [vmem:[%s225 + $0xc8] sm:$0xff]
      %v551 = vmul.f32 %v547, %v237
      %v552 = vmul.f32 %v548, %v238
      %v553 = vmul.f32 %v549, %v239
      %v554 = vmul.f32 %v550, %v240
      %v555 = vadd.f32 %v551, %v242
      %v556 = vadd.f32 %v552, %v243
      %v557 = vadd.f32 %v553, %v244
      %v558 = vadd.f32 %v554, %v245
      %v559 = vmax.f32 %v555, 0.0
      %v560 = vmax.f32 %v556, 0.0
      %v561 = vmax.f32 %v557, 0.0
      %v562 = vmax.f32 %v558, 0.0
      %v564 = vsel %vm270, %v559, 0
      %v567 = vsel %vm270, %v560, 0
      %v570 = vsel %vm270, %v561, 0
      %v573 = vsel %vm270, %v562, 0
      %575 = vmatprep.subr.mxu0 0.0
      %576 = vmatpush1.msra.mxu0 %v246
      %577 = vmatprep.subr.mxu0 0.0
      %578 = vmatpush1.msra.mxu0 %v247
      %579 = vmatprep.subr.mxu0 0.0
      %580 = vmatpush1.msra.mxu0 %v248
      %581 = vmatprep.subr.mxu0 0.0
      %582 = vmatpush1.msra.mxu0 %v249
      %583 = vmatprep.subr.mxu0 0.0
      %584 = vmatpush1.msra.mxu0 %v250
      %585 = vmatprep.subr.mxu0 0.0
      %586 = vmatpush1.msra.mxu0 %v251
      %587 = vmatprep.subr.mxu0 0.0
      %588 = vmatpush1.msra.mxu0 %v252
      %589 = vmatprep.subr.mxu0 0.0
      %590 = vmatpush1.msra.mxu0 %v253
      %591 = vmatprep.subr.mxu0 0.0
      %592 = vmatpush1.msra.mxu0 0.0
      %593 = vmatprep.subr.mxu0 0.0
      %594 = vmatpush1.msra.mxu0 0.0
      %595 = vmatprep.subr.mxu0 0.0
      %596 = vmatpush1.msra.mxu0 0.0
      %597 = vmatprep.subr.mxu0 0.0
      %598 = vmatpush1.msra.mxu0 0.0
      %599 = vmatprep.subr.mxu0 0.0
      %600 = vmatpush1.msra.mxu0 0.0
      %601 = vmatprep.subr.mxu0 0.0
      %602 = vmatpush1.msra.mxu0 0.0
      %603 = vmatprep.subr.mxu0 0.0
      %604 = vmatpush1.msra.mxu0 0.0
      %605 = vmatprep.subr.mxu0 0.0
      %606 = vmatpush1.msra.mxu0 0.0
      %607 = vmatprep.subr.mxu0 0.0
      %608 = vmatpush1.msra.mxu0 0.0
      %609 = vmatprep.subr.mxu0 0.0
      %610 = vmatpush1.msra.mxu0 0.0
      %611 = vmatprep.subr.mxu0 0.0
      %612 = vmatpush1.msra.mxu0 0.0
      %613 = vmatprep.subr.mxu0 0.0
      %614 = vmatpush1.msra.mxu0 0.0
      %615 = vmatprep.subr.mxu0 0.0
      %616 = vmatpush1.msra.mxu0 0.0
      %617 = vmatprep.subr.mxu0 0.0
      %618 = vmatpush1.msra.mxu0 0.0
      %619 = vmatprep.subr.mxu0 0.0
      %620 = vmatpush1.msra.mxu0 0.0
      %621 = vmatprep.subr.mxu0 0.0
      %622 = vmatpush1.msra.mxu0 0.0
      %623 = vmatprep.subr.mxu0 0.0
      %624 = vmatpush1.msra.mxu0 0.0
      %625 = vmatprep.subr.mxu0 0.0
      %626 = vmatpush1.msra.mxu0 0.0
      %627 = vmatprep.subr.mxu0 0.0
      %628 = vmatpush1.msra.mxu0 0.0
      %629 = vmatprep.subr.mxu0 0.0
      %630 = vmatpush1.msra.mxu0 0.0
      %631 = vmatprep.subr.mxu0 0.0
      %632 = vmatpush1.msra.mxu0 0.0
      %633 = vmatprep.subr.mxu0 0.0
      %634 = vmatpush1.msra.mxu0 0.0
      %635 = vmatprep.subr.mxu0 0.0
      %636 = vmatpush1.msra.mxu0 0.0
      %637 = vmatprep.subr.mxu0 0.0
      %638 = vmatpush1.msra.mxu0 0.0
      %639 = vmatprep.mubr.f32.mxu0 0.0
      %640 = vmatmul.mubr.f32.gmra.mrb[0].mxu0 %v564
      %v641 = vpop.f32.mrb[0].mxu0
      %v642 = vadd.f32 0.0, %v641
      %v643 = vpop.f32.mrb[0].mxu0
      %644 = vmatprep.mubr.f32.mxu0 0.0
      %645 = vmatmul.mubr.f32.gmra.mrb[0].mxu0 %v567
      %v646 = vpop.f32.mrb[0].mxu0
      %v647 = vadd.f32 0.0, %v646
      %v648 = vpop.f32.mrb[0].mxu0
      %649 = vmatprep.mubr.f32.mxu0 0.0
      %650 = vmatmul.mubr.f32.gmra.mrb[0].mxu0 %v570
      %v651 = vpop.f32.mrb[0].mxu0
      %v652 = vadd.f32 0.0, %v651
      %v653 = vpop.f32.mrb[0].mxu0
      %654 = vmatprep.mubr.f32.mxu0 0.0
      %655 = vmatmul.mubr.f32.gmra.mrb[0].mxu0 %v573
      %v656 = vpop.f32.mrb[0].mxu0
      %v657 = vadd.f32 0.0, %v656
      %v658 = vpop.f32.mrb[0].mxu0
      %659 = vdwg.mxu0
      %664 = vrot.lane.b32.xlu0 %v642, 32
      %v665 = vpop.permute.xlu0 %664
      %666 = vrot.lane.b32.xlu0 %v647, 32
      %v667 = vpop.permute.xlu0 %666
      %668 = vrot.lane.b32.xlu0 %v652, 32
      %v669 = vpop.permute.xlu0 %668
      %670 = vrot.lane.b32.xlu0 %v657, 32
      %v671 = vpop.permute.xlu0 %670
      %vm676 = vcmask 392448
      %677 = vst.msk [vmem:[#allocation2] sm:$0xff] %vm676, %v665
      %678 = vst.msk [vmem:[#allocation2 + $0x10] sm:$0xff] %vm676, %v667
      %679 = vst.msk [vmem:[#allocation2 + $0x20] sm:$0xff] %vm676, %v669
      %680 = vst.msk [vmem:[#allocation2 + $0x30] sm:$0xff] %vm676, %v671
      %v681 = vld [vmem:[%s225 + $0x8] sm:$0xff]
      %v682 = vld [vmem:[%s225 + $0x48] sm:$0xff]
      %v683 = vld [vmem:[%s225 + $0x88] sm:$0xff]
      %v684 = vld [vmem:[%s225 + $0xc8] sm:$0xff]
      %v685 = vmul.f32 %v681, %v382
      %v686 = vmul.f32 %v682, %v384
      %v687 = vmul.f32 %v683, %v386
      %v688 = vmul.f32 %v684, %v388
      %v689 = vadd.f32 %v685, %v402
      %v690 = vadd.f32 %v686, %v404
      %v691 = vadd.f32 %v687, %v406
      %v692 = vadd.f32 %v688, %v408
      %v693 = vmax.f32 %v689, 0.0
      %v694 = vmax.f32 %v690, 0.0
      %v695 = vmax.f32 %v691, 0.0
      %v696 = vmax.f32 %v692, 0.0
      %701 = vrot.lane.b32.xlu0 %v693, 64
      %v702 = vpop.permute.xlu0 %701
      %703 = vrot.lane.b32.xlu0 %v694, 64
      %v704 = vpop.permute.xlu0 %703
      %705 = vrot.lane.b32.xlu0 %v695, 64
      %v706 = vpop.permute.xlu0 %705
      %707 = vrot.lane.b32.xlu0 %v696, 64
      %v708 = vpop.permute.xlu0 %707
      %v709 = vsel %vm270, %v702, 0
      %v711 = vsel %vm270, %v704, 0
      %v713 = vsel %vm270, %v706, 0
      %v715 = vsel %vm270, %v708, 0
      %717 = vmatprep.subr.mxu0 0.0
      %718 = vmatpush1.msra.mxu0 %v246
      %719 = vmatprep.subr.mxu0 0.0
      %720 = vmatpush1.msra.mxu0 %v247
      %721 = vmatprep.subr.mxu0 0.0
      %722 = vmatpush1.msra.mxu0 %v248
      %723 = vmatprep.subr.mxu0 0.0
      %724 = vmatpush1.msra.mxu0 %v249
      %725 = vmatprep.subr.mxu0 0.0
      %726 = vmatpush1.msra.mxu0 %v250
      %727 = vmatprep.subr.mxu0 0.0
      %728 = vmatpush1.msra.mxu0 %v251
      %729 = vmatprep.subr.mxu0 0.0
      %730 = vmatpush1.msra.mxu0 %v252
      %731 = vmatprep.subr.mxu0 0.0
      %732 = vmatpush1.msra.mxu0 %v253
      %733 = vmatprep.subr.mxu0 0.0
      %734 = vmatpush1.msra.mxu0 0.0
      %735 = vmatprep.subr.mxu0 0.0
      %736 = vmatpush1.msra.mxu0 0.0
      %737 = vmatprep.subr.mxu0 0.0
      %738 = vmatpush1.msra.mxu0 0.0
      %739 = vmatprep.subr.mxu0 0.0
      %740 = vmatpush1.msra.mxu0 0.0
      %741 = vmatprep.subr.mxu0 0.0
      %742 = vmatpush1.msra.mxu0 0.0
      %743 = vmatprep.subr.mxu0 0.0
      %744 = vmatpush1.msra.mxu0 0.0
      %745 = vmatprep.subr.mxu0 0.0
      %746 = vmatpush1.msra.mxu0 0.0
      %747 = vmatprep.subr.mxu0 0.0
      %748 = vmatpush1.msra.mxu0 0.0
      %749 = vmatprep.subr.mxu0 0.0
      %750 = vmatpush1.msra.mxu0 0.0
      %751 = vmatprep.subr.mxu0 0.0
      %752 = vmatpush1.msra.mxu0 0.0
      %753 = vmatprep.subr.mxu0 0.0
      %754 = vmatpush1.msra.mxu0 0.0
      %755 = vmatprep.subr.mxu0 0.0
      %756 = vmatpush1.msra.mxu0 0.0
      %757 = vmatprep.subr.mxu0 0.0
      %758 = vmatpush1.msra.mxu0 0.0
      %759 = vmatprep.subr.mxu0 0.0
      %760 = vmatpush1.msra.mxu0 0.0
      %761 = vmatprep.subr.mxu0 0.0
      %762 = vmatpush1.msra.mxu0 0.0
      %763 = vmatprep.subr.mxu0 0.0
      %764 = vmatpush1.msra.mxu0 0.0
      %765 = vmatprep.subr.mxu0 0.0
      %766 = vmatpush1.msra.mxu0 0.0
      %767 = vmatprep.subr.mxu0 0.0
      %768 = vmatpush1.msra.mxu0 0.0
      %769 = vmatprep.subr.mxu0 0.0
      %770 = vmatpush1.msra.mxu0 0.0
      %771 = vmatprep.subr.mxu0 0.0
      %772 = vmatpush1.msra.mxu0 0.0
      %773 = vmatprep.subr.mxu0 0.0
      %774 = vmatpush1.msra.mxu0 0.0
      %775 = vmatprep.subr.mxu0 0.0
      %776 = vmatpush1.msra.mxu0 0.0
      %777 = vmatprep.subr.mxu0 0.0
      %778 = vmatpush1.msra.mxu0 0.0
      %779 = vmatprep.subr.mxu0 0.0
      %780 = vmatpush1.msra.mxu0 0.0
      %781 = vmatprep.mubr.f32.mxu0 0.0
      %782 = vmatmul.mubr.f32.gmra.mrb[0].mxu0 %v709
      %v783 = vpop.f32.mrb[0].mxu0
      %v784 = vadd.f32 0.0, %v783
      %v785 = vpop.f32.mrb[0].mxu0
      %786 = vmatprep.mubr.f32.mxu0 0.0
      %787 = vmatmul.mubr.f32.gmra.mrb[0].mxu0 %v711
      %v788 = vpop.f32.mrb[0].mxu0
      %v789 = vadd.f32 0.0, %v788
      %v790 = vpop.f32.mrb[0].mxu0
      %791 = vmatprep.mubr.f32.mxu0 0.0
      %792 = vmatmul.mubr.f32.gmra.mrb[0].mxu0 %v713
      %v793 = vpop.f32.mrb[0].mxu0
      %v794 = vadd.f32 0.0, %v793
      %v795 = vpop.f32.mrb[0].mxu0
      %796 = vmatprep.mubr.f32.mxu0 0.0
      %797 = vmatmul.mubr.f32.gmra.mrb[0].mxu0 %v715
      %v798 = vpop.f32.mrb[0].mxu0
      %v799 = vadd.f32 0.0, %v798
      %v800 = vpop.f32.mrb[0].mxu0
      %801 = vdwg.mxu0
      %806 = vrot.lane.b32.xlu0 %v784, 48
      %v807 = vpop.permute.xlu0 %806
      %808 = vrot.lane.b32.xlu0 %v789, 48
      %v809 = vpop.permute.xlu0 %808
      %810 = vrot.lane.b32.xlu0 %v794, 48
      %v811 = vpop.permute.xlu0 %810
      %812 = vrot.lane.b32.xlu0 %v799, 48
      %v813 = vpop.permute.xlu0 %812
      %vm818 = vcmask 523648
      %819 = vst.msk [vmem:[#allocation2] sm:$0xff] %vm818, %v807
      %820 = vst.msk [vmem:[#allocation2 + $0x10] sm:$0xff] %vm818, %v809
      %821 = vst.msk [vmem:[#allocation2 + $0x20] sm:$0xff] %vm818, %v811
      %822 = vst.msk [vmem:[#allocation2 + $0x30] sm:$0xff] %vm818, %v813
      %v823 = vld [vmem:[%s225 + $0x10] sm:$0xff]
      %v824 = vld [vmem:[%s225 + $0x50] sm:$0xff]
      %v825 = vld [vmem:[%s225 + $0x90] sm:$0xff]
      %v826 = vld [vmem:[%s225 + $0xd0] sm:$0xff]
      %v827 = vmul.f32 %v823, %v237
      %v828 = vmul.f32 %v824, %v238
      %v829 = vmul.f32 %v825, %v239
      %v830 = vmul.f32 %v826, %v240
      %v831 = vadd.f32 %v827, %v242
      %v832 = vadd.f32 %v828, %v243
      %v833 = vadd.f32 %v829, %v244
      %v834 = vadd.f32 %v830, %v245
      %v835 = vmax.f32 %v831, 0.0
      %v836 = vmax.f32 %v832, 0.0
      %v837 = vmax.f32 %v833, 0.0
      %v838 = vmax.f32 %v834, 0.0
      %v840 = vsel %vm270, %v835, 0
      %v843 = vsel %vm270, %v836, 0
      %v846 = vsel %vm270, %v837, 0
      %v849 = vsel %vm270, %v838, 0
      %851 = vmatprep.subr.mxu0 0.0
      %852 = vmatpush1.msra.mxu0 %v246
      %853 = vmatprep.subr.mxu0 0.0
      %854 = vmatpush1.msra.mxu0 %v247
      %855 = vmatprep.subr.mxu0 0.0
      %856 = vmatpush1.msra.mxu0 %v248
      %857 = vmatprep.subr.mxu0 0.0
      %858 = vmatpush1.msra.mxu0 %v249
      %859 = vmatprep.subr.mxu0 0.0
      %860 = vmatpush1.msra.mxu0 %v250
      %861 = vmatprep.subr.mxu0 0.0
      %862 = vmatpush1.msra.mxu0 %v251
      %863 = vmatprep.subr.mxu0 0.0
      %864 = vmatpush1.msra.mxu0 %v252
      %865 = vmatprep.subr.mxu0 0.0
      %866 = vmatpush1.msra.mxu0 %v253
      %867 = vmatprep.subr.mxu0 0.0
      %868 = vmatpush1.msra.mxu0 0.0
      %869 = vmatprep.subr.mxu0 0.0
      %870 = vmatpush1.msra.mxu0 0.0
      %871 = vmatprep.subr.mxu0 0.0
      %872 = vmatpush1.msra.mxu0 0.0
      %873 = vmatprep.subr.mxu0 0.0
      %874 = vmatpush1.msra.mxu0 0.0
      %875 = vmatprep.subr.mxu0 0.0
      %876 = vmatpush1.msra.mxu0 0.0
      %877 = vmatprep.subr.mxu0 0.0
      %878 = vmatpush1.msra.mxu0 0.0
      %879 = vmatprep.subr.mxu0 0.0
      %880 = vmatpush1.msra.mxu0 0.0
      %881 = vmatprep.subr.mxu0 0.0
      %882 = vmatpush1.msra.mxu0 0.0
      %883 = vmatprep.subr.mxu0 0.0
      %884 = vmatpush1.msra.mxu0 0.0
      %885 = vmatprep.subr.mxu0 0.0
      %886 = vmatpush1.msra.mxu0 0.0
      %887 = vmatprep.subr.mxu0 0.0
      %888 = vmatpush1.msra.mxu0 0.0
      %889 = vmatprep.subr.mxu0 0.0
      %890 = vmatpush1.msra.mxu0 0.0
      %891 = vmatprep.subr.mxu0 0.0
      %892 = vmatpush1.msra.mxu0 0.0
      %893 = vmatprep.subr.mxu0 0.0
      %894 = vmatpush1.msra.mxu0 0.0
      %895 = vmatprep.subr.mxu0 0.0
      %896 = vmatpush1.msra.mxu0 0.0
      %897 = vmatprep.subr.mxu0 0.0
      %898 = vmatpush1.msra.mxu0 0.0
      %899 = vmatprep.subr.mxu0 0.0
      %900 = vmatpush1.msra.mxu0 0.0
      %901 = vmatprep.subr.mxu0 0.0
      %902 = vmatpush1.msra.mxu0 0.0
      %903 = vmatprep.subr.mxu0 0.0
      %904 = vmatpush1.msra.mxu0 0.0
      %905 = vmatprep.subr.mxu0 0.0
      %906 = vmatpush1.msra.mxu0 0.0
      %907 = vmatprep.subr.mxu0 0.0
      %908 = vmatpush1.msra.mxu0 0.0
      %909 = vmatprep.subr.mxu0 0.0
      %910 = vmatpush1.msra.mxu0 0.0
      %911 = vmatprep.subr.mxu0 0.0
      %912 = vmatpush1.msra.mxu0 0.0
      %913 = vmatprep.subr.mxu0 0.0
      %914 = vmatpush1.msra.mxu0 0.0
      %915 = vmatprep.mubr.f32.mxu0 0.0
      %916 = vmatmul.mubr.f32.gmra.mrb[0].mxu0 %v840
      %v917 = vpop.f32.mrb[0].mxu0
      %v918 = vadd.f32 0.0, %v917
      %v919 = vpop.f32.mrb[0].mxu0
      %920 = vmatprep.mubr.f32.mxu0 0.0
      %921 = vmatmul.mubr.f32.gmra.mrb[0].mxu0 %v843
      %v922 = vpop.f32.mrb[0].mxu0
      %v923 = vadd.f32 0.0, %v922
      %v924 = vpop.f32.mrb[0].mxu0
      %925 = vmatprep.mubr.f32.mxu0 0.0
      %926 = vmatmul.mubr.f32.gmra.mrb[0].mxu0 %v846
      %v927 = vpop.f32.mrb[0].mxu0
      %v928 = vadd.f32 0.0, %v927
      %v929 = vpop.f32.mrb[0].mxu0
      %930 = vmatprep.mubr.f32.mxu0 0.0
      %931 = vmatmul.mubr.f32.gmra.mrb[0].mxu0 %v849
      %v932 = vpop.f32.mrb[0].mxu0
      %v933 = vadd.f32 0.0, %v932
      %v934 = vpop.f32.mrb[0].mxu0
      %935 = vdwg.mxu0
      %940 = vrot.lane.b32.xlu0 %v918, 64
      %v941 = vpop.permute.xlu0 %940
      %942 = vrot.lane.b32.xlu0 %v923, 64
      %v943 = vpop.permute.xlu0 %942
      %944 = vrot.lane.b32.xlu0 %v928, 64
      %v945 = vpop.permute.xlu0 %944
      %946 = vrot.lane.b32.xlu0 %v933, 64
      %v947 = vpop.permute.xlu0 %946
      %vm952 = vcmask 654848
      %953 = vst.msk [vmem:[#allocation2] sm:$0xff] %vm952, %v941
      %954 = vst.msk [vmem:[#allocation2 + $0x10] sm:$0xff] %vm952, %v943
      %955 = vst.msk [vmem:[#allocation2 + $0x20] sm:$0xff] %vm952, %v945
      %956 = vst.msk [vmem:[#allocation2 + $0x30] sm:$0xff] %vm952, %v947
      %v957 = vld [vmem:[%s225 + $0x10] sm:$0xff]
      %v958 = vld [vmem:[%s225 + $0x50] sm:$0xff]
      %v959 = vld [vmem:[%s225 + $0x90] sm:$0xff]
      %v960 = vld [vmem:[%s225 + $0xd0] sm:$0xff]
      %v961 = vmul.f32 %v957, %v382
      %v962 = vmul.f32 %v958, %v384
      %v963 = vmul.f32 %v959, %v386
      %v964 = vmul.f32 %v960, %v388
      %v965 = vadd.f32 %v961, %v402
      %v966 = vadd.f32 %v962, %v404
      %v967 = vadd.f32 %v963, %v406
      %v968 = vadd.f32 %v964, %v408
      %v969 = vmax.f32 %v965, 0.0
      %v970 = vmax.f32 %v966, 0.0
      %v971 = vmax.f32 %v967, 0.0
      %v972 = vmax.f32 %v968, 0.0
      %977 = vrot.lane.b32.xlu0 %v969, 64
      %v978 = vpop.permute.xlu0 %977
      %979 = vrot.lane.b32.xlu0 %v970, 64
      %v980 = vpop.permute.xlu0 %979
      %981 = vrot.lane.b32.xlu0 %v971, 64
      %v982 = vpop.permute.xlu0 %981
      %983 = vrot.lane.b32.xlu0 %v972, 64
      %v984 = vpop.permute.xlu0 %983
      %v985 = vsel %vm270, %v978, 0
      %v987 = vsel %vm270, %v980, 0
      %v989 = vsel %vm270, %v982, 0
      %v991 = vsel %vm270, %v984, 0
      %993 = vmatprep.subr.mxu0 0.0
      %994 = vmatpush1.msra.mxu0 %v246
      %995 = vmatprep.subr.mxu0 0.0
      %996 = vmatpush1.msra.mxu0 %v247
      %997 = vmatprep.subr.mxu0 0.0
      %998 = vmatpush1.msra.mxu0 %v248
      %999 = vmatprep.subr.mxu0 0.0
      %1000 = vmatpush1.msra.mxu0 %v249
      %1001 = vmatprep.subr.mxu0 0.0
      %1002 = vmatpush1.msra.mxu0 %v250
      %1003 = vmatprep.subr.mxu0 0.0
      %1004 = vmatpush1.msra.mxu0 %v251
      %1005 = vmatprep.subr.mxu0 0.0
      %1006 = vmatpush1.msra.mxu0 %v252
      %1007 = vmatprep.subr.mxu0 0.0
      %1008 = vmatpush1.msra.mxu0 %v253
      %1009 = vmatprep.subr.mxu0 0.0
      %1010 = vmatpush1.msra.mxu0 0.0
      %1011 = vmatprep.subr.mxu0 0.0
      %1012 = vmatpush1.msra.mxu0 0.0
      %1013 = vmatprep.subr.mxu0 0.0
      %1014 = vmatpush1.msra.mxu0 0.0
      %1015 = vmatprep.subr.mxu0 0.0
      %1016 = vmatpush1.msra.mxu0 0.0
      %1017 = vmatprep.subr.mxu0 0.0
      %1018 = vmatpush1.msra.mxu0 0.0
      %1019 = vmatprep.subr.mxu0 0.0
      %1020 = vmatpush1.msra.mxu0 0.0
      %1021 = vmatprep.subr.mxu0 0.0
      %1022 = vmatpush1.msra.mxu0 0.0
      %1023 = vmatprep.subr.mxu0 0.0
      %1024 = vmatpush1.msra.mxu0 0.0
      %1025 = vmatprep.subr.mxu0 0.0
      %1026 = vmatpush1.msra.mxu0 0.0
      %1027 = vmatprep.subr.mxu0 0.0
      %1028 = vmatpush1.msra.mxu0 0.0
      %1029 = vmatprep.subr.mxu0 0.0
      %1030 = vmatpush1.msra.mxu0 0.0
      %1031 = vmatprep.subr.mxu0 0.0
      %1032 = vmatpush1.msra.mxu0 0.0
      %1033 = vmatprep.subr.mxu0 0.0
      %1034 = vmatpush1.msra.mxu0 0.0
      %1035 = vmatprep.subr.mxu0 0.0
      %1036 = vmatpush1.msra.mxu0 0.0
      %1037 = vmatprep.subr.mxu0 0.0
      %1038 = vmatpush1.msra.mxu0 0.0
      %1039 = vmatprep.subr.mxu0 0.0
      %1040 = vmatpush1.msra.mxu0 0.0
      %1041 = vmatprep.subr.mxu0 0.0
      %1042 = vmatpush1.msra.mxu0 0.0
      %1043 = vmatprep.subr.mxu0 0.0
      %1044 = vmatpush1.msra.mxu0 0.0
      %1045 = vmatprep.subr.mxu0 0.0
      %1046 = vmatpush1.msra.mxu0 0.0
      %1047 = vmatprep.subr.mxu0 0.0
      %1048 = vmatpush1.msra.mxu0 0.0
      %1049 = vmatprep.subr.mxu0 0.0
      %1050 = vmatpush1.msra.mxu0 0.0
      %1051 = vmatprep.subr.mxu0 0.0
      %1052 = vmatpush1.msra.mxu0 0.0
      %1053 = vmatprep.subr.mxu0 0.0
      %1054 = vmatpush1.msra.mxu0 0.0
      %1055 = vmatprep.subr.mxu0 0.0
      %1056 = vmatpush1.msra.mxu0 0.0
      %1057 = vmatprep.mubr.f32.mxu0 0.0
      %1058 = vmatmul.mubr.f32.gmra.mrb[0].mxu0 %v985
      %v1059 = vpop.f32.mrb[0].mxu0
      %v1060 = vadd.f32 0.0, %v1059
      %v1061 = vpop.f32.mrb[0].mxu0
      %1062 = vmatprep.mubr.f32.mxu0 0.0
      %1063 = vmatmul.mubr.f32.gmra.mrb[0].mxu0 %v987
      %v1064 = vpop.f32.mrb[0].mxu0
      %v1065 = vadd.f32 0.0, %v1064
      %v1066 = vpop.f32.mrb[0].mxu0
      %1067 = vmatprep.mubr.f32.mxu0 0.0
      %1068 = vmatmul.mubr.f32.gmra.mrb[0].mxu0 %v989
      %v1069 = vpop.f32.mrb[0].mxu0
      %v1070 = vadd.f32 0.0, %v1069
      %v1071 = vpop.f32.mrb[0].mxu0
      %1072 = vmatprep.mubr.f32.mxu0 0.0
      %1073 = vmatmul.mubr.f32.gmra.mrb[0].mxu0 %v991
      %v1074 = vpop.f32.mrb[0].mxu0
      %v1075 = vadd.f32 0.0, %v1074
      %v1076 = vpop.f32.mrb[0].mxu0
      %1077 = vdwg.mxu0
      %1082 = vrot.lane.b32.xlu0 %v1060, 80
      %v1083 = vpop.permute.xlu0 %1082
      %1084 = vrot.lane.b32.xlu0 %v1065, 80
      %v1085 = vpop.permute.xlu0 %1084
      %1086 = vrot.lane.b32.xlu0 %v1070, 80
      %v1087 = vpop.permute.xlu0 %1086
      %1088 = vrot.lane.b32.xlu0 %v1075, 80
      %v1089 = vpop.permute.xlu0 %1088
      %vm1094 = vcmask 786048
      %1095 = vst.msk [vmem:[#allocation2] sm:$0xff] %vm1094, %v1083
      %1096 = vst.msk [vmem:[#allocation2 + $0x10] sm:$0xff] %vm1094, %v1085
      %1097 = vst.msk [vmem:[#allocation2 + $0x20] sm:$0xff] %vm1094, %v1087
      %1098 = vst.msk [vmem:[#allocation2 + $0x30] sm:$0xff] %vm1094, %v1089
      %v1099 = vld [vmem:[%s225 + $0x18] sm:$0xff]
      %v1100 = vld [vmem:[%s225 + $0x58] sm:$0xff]
      %v1101 = vld [vmem:[%s225 + $0x98] sm:$0xff]
      %v1102 = vld [vmem:[%s225 + $0xd8] sm:$0xff]
      %v1103 = vmul.f32 %v1099, %v237
      %v1104 = vmul.f32 %v1100, %v238
      %v1105 = vmul.f32 %v1101, %v239
      %v1106 = vmul.f32 %v1102, %v240
      %v1107 = vadd.f32 %v1103, %v242
      %v1108 = vadd.f32 %v1104, %v243
      %v1109 = vadd.f32 %v1105, %v244
      %v1110 = vadd.f32 %v1106, %v245
      %v1111 = vmax.f32 %v1107, 0.0
      %v1112 = vmax.f32 %v1108, 0.0
      %v1113 = vmax.f32 %v1109, 0.0
      %v1114 = vmax.f32 %v1110, 0.0
      %v1116 = vsel %vm270, %v1111, 0
      %v1119 = vsel %vm270, %v1112, 0
      %v1122 = vsel %vm270, %v1113, 0
      %v1125 = vsel %vm270, %v1114, 0
      %1127 = vmatprep.subr.mxu0 0.0
      %1128 = vmatpush1.msra.mxu0 %v246
      %1129 = vmatprep.subr.mxu0 0.0
      %1130 = vmatpush1.msra.mxu0 %v247
      %1131 = vmatprep.subr.mxu0 0.0
      %1132 = vmatpush1.msra.mxu0 %v248
      %1133 = vmatprep.subr.mxu0 0.0
      %1134 = vmatpush1.msra.mxu0 %v249
      %1135 = vmatprep.subr.mxu0 0.0
      %1136 = vmatpush1.msra.mxu0 %v250
      %1137 = vmatprep.subr.mxu0 0.0
      %1138 = vmatpush1.msra.mxu0 %v251
      %1139 = vmatprep.subr.mxu0 0.0
      %1140 = vmatpush1.msra.mxu0 %v252
      %1141 = vmatprep.subr.mxu0 0.0
      %1142 = vmatpush1.msra.mxu0 %v253
      %1143 = vmatprep.subr.mxu0 0.0
      %1144 = vmatpush1.msra.mxu0 0.0
      %1145 = vmatprep.subr.mxu0 0.0
      %1146 = vmatpush1.msra.mxu0 0.0
      %1147 = vmatprep.subr.mxu0 0.0
      %1148 = vmatpush1.msra.mxu0 0.0
      %1149 = vmatprep.subr.mxu0 0.0
      %1150 = vmatpush1.msra.mxu0 0.0
      %1151 = vmatprep.subr.mxu0 0.0
      %1152 = vmatpush1.msra.mxu0 0.0
      %1153 = vmatprep.subr.mxu0 0.0
      %1154 = vmatpush1.msra.mxu0 0.0
      %1155 = vmatprep.subr.mxu0 0.0
      %1156 = vmatpush1.msra.mxu0 0.0
      %1157 = vmatprep.subr.mxu0 0.0
      %1158 = vmatpush1.msra.mxu0 0.0
      %1159 = vmatprep.subr.mxu0 0.0
      %1160 = vmatpush1.msra.mxu0 0.0
      %1161 = vmatprep.subr.mxu0 0.0
      %1162 = vmatpush1.msra.mxu0 0.0
      %1163 = vmatprep.subr.mxu0 0.0
      %1164 = vmatpush1.msra.mxu0 0.0
      %1165 = vmatprep.subr.mxu0 0.0
      %1166 = vmatpush1.msra.mxu0 0.0
      %1167 = vmatprep.subr.mxu0 0.0
      %1168 = vmatpush1.msra.mxu0 0.0
      %1169 = vmatprep.subr.mxu0 0.0
      %1170 = vmatpush1.msra.mxu0 0.0
      %1171 = vmatprep.subr.mxu0 0.0
      %1172 = vmatpush1.msra.mxu0 0.0
      %1173 = vmatprep.subr.mxu0 0.0
      %1174 = vmatpush1.msra.mxu0 0.0
      %1175 = vmatprep.subr.mxu0 0.0
      %1176 = vmatpush1.msra.mxu0 0.0
      %1177 = vmatprep.subr.mxu0 0.0
      %1178 = vmatpush1.msra.mxu0 0.0
      %1179 = vmatprep.subr.mxu0 0.0
      %1180 = vmatpush1.msra.mxu0 0.0
      %1181 = vmatprep.subr.mxu0 0.0
      %1182 = vmatpush1.msra.mxu0 0.0
      %1183 = vmatprep.subr.mxu0 0.0
      %1184 = vmatpush1.msra.mxu0 0.0
      %1185 = vmatprep.subr.mxu0 0.0
      %1186 = vmatpush1.msra.mxu0 0.0
      %1187 = vmatprep.subr.mxu0 0.0
      %1188 = vmatpush1.msra.mxu0 0.0
      %1189 = vmatprep.subr.mxu0 0.0
      %1190 = vmatpush1.msra.mxu0 0.0
      %1191 = vmatprep.mubr.f32.mxu0 0.0
      %1192 = vmatmul.mubr.f32.gmra.mrb[0].mxu0 %v1116
      %v1193 = vpop.f32.mrb[0].mxu0
      %v1194 = vadd.f32 0.0, %v1193
      %v1195 = vpop.f32.mrb[0].mxu0
      %1196 = vmatprep.mubr.f32.mxu0 0.0
      %1197 = vmatmul.mubr.f32.gmra.mrb[0].mxu0 %v1119
      %v1198 = vpop.f32.mrb[0].mxu0
      %v1199 = vadd.f32 0.0, %v1198
      %v1200 = vpop.f32.mrb[0].mxu0
      %1201 = vmatprep.mubr.f32.mxu0 0.0
      %1202 = vmatmul.mubr.f32.gmra.mrb[0].mxu0 %v1122
      %v1203 = vpop.f32.mrb[0].mxu0
      %v1204 = vadd.f32 0.0, %v1203
      %v1205 = vpop.f32.mrb[0].mxu0
      %1206 = vmatprep.mubr.f32.mxu0 0.0
      %1207 = vmatmul.mubr.f32.gmra.mrb[0].mxu0 %v1125
      %v1208 = vpop.f32.mrb[0].mxu0
      %v1209 = vadd.f32 0.0, %v1208
      %v1210 = vpop.f32.mrb[0].mxu0
      %1211 = vdwg.mxu0
      %1216 = vrot.lane.b32.xlu0 %v1194, 96
      %v1217 = vpop.permute.xlu0 %1216
      %1218 = vrot.lane.b32.xlu0 %v1199, 96
      %v1219 = vpop.permute.xlu0 %1218
      %1220 = vrot.lane.b32.xlu0 %v1204, 96
      %v1221 = vpop.permute.xlu0 %1220
      %1222 = vrot.lane.b32.xlu0 %v1209, 96
      %v1223 = vpop.permute.xlu0 %1222
      %vm1228 = vcmask 917248
      %1229 = vst.msk [vmem:[#allocation2] sm:$0xff] %vm1228, %v1217
      %1230 = vst.msk [vmem:[#allocation2 + $0x10] sm:$0xff] %vm1228, %v1219
      %1231 = vst.msk [vmem:[#allocation2 + $0x20] sm:$0xff] %vm1228, %v1221
      %1232 = vst.msk [vmem:[#allocation2 + $0x30] sm:$0xff] %vm1228, %v1223
      %v1233 = vld [vmem:[%s225 + $0x18] sm:$0xff]
      %v1234 = vld [vmem:[%s225 + $0x58] sm:$0xff]
      %v1235 = vld [vmem:[%s225 + $0x98] sm:$0xff]
      %v1236 = vld [vmem:[%s225 + $0xd8] sm:$0xff]
      %v1237 = vmul.f32 %v1233, %v382
      %v1238 = vmul.f32 %v1234, %v384
      %v1239 = vmul.f32 %v1235, %v386
      %v1240 = vmul.f32 %v1236, %v388
      %v1241 = vadd.f32 %v1237, %v402
      %v1242 = vadd.f32 %v1238, %v404
      %v1243 = vadd.f32 %v1239, %v406
      %v1244 = vadd.f32 %v1240, %v408
      %v1245 = vmax.f32 %v1241, 0.0
      %v1246 = vmax.f32 %v1242, 0.0
      %v1247 = vmax.f32 %v1243, 0.0
      %v1248 = vmax.f32 %v1244, 0.0
      %1253 = vrot.lane.b32.xlu0 %v1245, 64
      %v1254 = vpop.permute.xlu0 %1253
      %1255 = vrot.lane.b32.xlu0 %v1246, 64
      %v1256 = vpop.permute.xlu0 %1255
      %1257 = vrot.lane.b32.xlu0 %v1247, 64
      %v1258 = vpop.permute.xlu0 %1257
      %1259 = vrot.lane.b32.xlu0 %v1248, 64
      %v1260 = vpop.permute.xlu0 %1259
      %v1261 = vsel %vm270, %v1254, 0
      %v1263 = vsel %vm270, %v1256, 0
      %v1265 = vsel %vm270, %v1258, 0
      %v1267 = vsel %vm270, %v1260, 0
      %1269 = vmatprep.subr.mxu0 0.0
      %1270 = vmatpush1.msra.mxu0 %v246
      %1271 = vmatprep.subr.mxu0 0.0
      %1272 = vmatpush1.msra.mxu0 %v247
      %1273 = vmatprep.subr.mxu0 0.0
      %1274 = vmatpush1.msra.mxu0 %v248
      %1275 = vmatprep.subr.mxu0 0.0
      %1276 = vmatpush1.msra.mxu0 %v249
      %1277 = vmatprep.subr.mxu0 0.0
      %1278 = vmatpush1.msra.mxu0 %v250
      %1279 = vmatprep.subr.mxu0 0.0
      %1280 = vmatpush1.msra.mxu0 %v251
      %1281 = vmatprep.subr.mxu0 0.0
      %1282 = vmatpush1.msra.mxu0 %v252
      %1283 = vmatprep.subr.mxu0 0.0
      %1284 = vmatpush1.msra.mxu0 %v253
      %1285 = vmatprep.subr.mxu0 0.0
      %1286 = vmatpush1.msra.mxu0 0.0
      %1287 = vmatprep.subr.mxu0 0.0
      %1288 = vmatpush1.msra.mxu0 0.0
      %1289 = vmatprep.subr.mxu0 0.0
      %1290 = vmatpush1.msra.mxu0 0.0
      %1291 = vmatprep.subr.mxu0 0.0
      %1292 = vmatpush1.msra.mxu0 0.0
      %1293 = vmatprep.subr.mxu0 0.0
      %1294 = vmatpush1.msra.mxu0 0.0
      %1295 = vmatprep.subr.mxu0 0.0
      %1296 = vmatpush1.msra.mxu0 0.0
      %1297 = vmatprep.subr.mxu0 0.0
      %1298 = vmatpush1.msra.mxu0 0.0
      %1299 = vmatprep.subr.mxu0 0.0
      %1300 = vmatpush1.msra.mxu0 0.0
      %1301 = vmatprep.subr.mxu0 0.0
      %1302 = vmatpush1.msra.mxu0 0.0
      %1303 = vmatprep.subr.mxu0 0.0
      %1304 = vmatpush1.msra.mxu0 0.0
      %1305 = vmatprep.subr.mxu0 0.0
      %1306 = vmatpush1.msra.mxu0 0.0
      %1307 = vmatprep.subr.mxu0 0.0
      %1308 = vmatpush1.msra.mxu0 0.0
      %1309 = vmatprep.subr.mxu0 0.0
      %1310 = vmatpush1.msra.mxu0 0.0
      %1311 = vmatprep.subr.mxu0 0.0
      %1312 = vmatpush1.msra.mxu0 0.0
      %1313 = vmatprep.subr.mxu0 0.0
      %1314 = vmatpush1.msra.mxu0 0.0
      %1315 = vmatprep.subr.mxu0 0.0
      %1316 = vmatpush1.msra.mxu0 0.0
      %1317 = vmatprep.subr.mxu0 0.0
      %1318 = vmatpush1.msra.mxu0 0.0
      %1319 = vmatprep.subr.mxu0 0.0
      %1320 = vmatpush1.msra.mxu0 0.0
      %1321 = vmatprep.subr.mxu0 0.0
      %1322 = vmatpush1.msra.mxu0 0.0
      %1323 = vmatprep.subr.mxu0 0.0
      %1324 = vmatpush1.msra.mxu0 0.0
      %1325 = vmatprep.subr.mxu0 0.0
      %1326 = vmatpush1.msra.mxu0 0.0
      %1327 = vmatprep.subr.mxu0 0.0
      %1328 = vmatpush1.msra.mxu0 0.0
      %1329 = vmatprep.subr.mxu0 0.0
      %1330 = vmatpush1.msra.mxu0 0.0
      %1331 = vmatprep.subr.mxu0 0.0
      %1332 = vmatpush1.msra.mxu0 0.0
      %1333 = vmatprep.mubr.f32.mxu0 0.0
      %1334 = vmatmul.mubr.f32.gmra.mrb[0].mxu0 %v1261
      %v1335 = vpop.f32.mrb[0].mxu0
      %v1336 = vadd.f32 0.0, %v1335
      %v1337 = vpop.f32.mrb[0].mxu0
      %1338 = vmatprep.mubr.f32.mxu0 0.0
      %1339 = vmatmul.mubr.f32.gmra.mrb[0].mxu0 %v1263
      %v1340 = vpop.f32.mrb[0].mxu0
      %v1341 = vadd.f32 0.0, %v1340
      %v1342 = vpop.f32.mrb[0].mxu0
      %1343 = vmatprep.mubr.f32.mxu0 0.0
      %1344 = vmatmul.mubr.f32.gmra.mrb[0].mxu0 %v1265
      %v1345 = vpop.f32.mrb[0].mxu0
      %v1346 = vadd.f32 0.0, %v1345
      %v1347 = vpop.f32.mrb[0].mxu0
      %1348 = vmatprep.mubr.f32.mxu0 0.0
      %1349 = vmatmul.mubr.f32.gmra.mrb[0].mxu0 %v1267
      %v1350 = vpop.f32.mrb[0].mxu0
      %v1351 = vadd.f32 0.0, %v1350
      %v1352 = vpop.f32.mrb[0].mxu0
      %1353 = vdwg.mxu0
      %1358 = vrot.lane.b32.xlu0 %v1336, 112
      %v1359 = vpop.permute.xlu0 %1358
      %1360 = vrot.lane.b32.xlu0 %v1341, 112
      %v1361 = vpop.permute.xlu0 %1360
      %1362 = vrot.lane.b32.xlu0 %v1346, 112
      %v1363 = vpop.permute.xlu0 %1362
      %1364 = vrot.lane.b32.xlu0 %v1351, 112
      %v1365 = vpop.permute.xlu0 %1364
      %vm1370 = vcmask 1048448
      %1371 = vst.msk [vmem:[#allocation2] sm:$0xff] %vm1370, %v1359
      %1372 = vst.msk [vmem:[#allocation2 + $0x10] sm:$0xff] %vm1370, %v1361
      %1373 = vst.msk [vmem:[#allocation2 + $0x20] sm:$0xff] %vm1370, %v1363
      %1374 = vst.msk [vmem:[#allocation2 + $0x30] sm:$0xff] %vm1370, %v1365
      %v1375 = vld [vmem:[%s225 + $0x20] sm:$0xff]
      %v1376 = vld [vmem:[%s225 + $0x60] sm:$0xff]
      %v1377 = vld [vmem:[%s225 + $0xa0] sm:$0xff]
      %v1378 = vld [vmem:[%s225 + $0xe0] sm:$0xff]
      %v1379 = vmul.f32 %v1375, %v237
      %v1380 = vmul.f32 %v1376, %v238
      %v1381 = vmul.f32 %v1377, %v239
      %v1382 = vmul.f32 %v1378, %v240
      %v1383 = vadd.f32 %v1379, %v242
      %v1384 = vadd.f32 %v1380, %v243
      %v1385 = vadd.f32 %v1381, %v244
      %v1386 = vadd.f32 %v1382, %v245
      %v1387 = vmax.f32 %v1383, 0.0
      %v1388 = vmax.f32 %v1384, 0.0
      %v1389 = vmax.f32 %v1385, 0.0
      %v1390 = vmax.f32 %v1386, 0.0
      %v1392 = vsel %vm270, %v1387, 0
      %v1395 = vsel %vm270, %v1388, 0
      %v1398 = vsel %vm270, %v1389, 0
      %v1401 = vsel %vm270, %v1390, 0
      %1403 = vmatprep.subr.mxu0 0.0
      %1404 = vmatpush1.msra.mxu0 %v246
      %1405 = vmatprep.subr.mxu0 0.0
      %1406 = vmatpush1.msra.mxu0 %v247
      %1407 = vmatprep.subr.mxu0 0.0
      %1408 = vmatpush1.msra.mxu0 %v248
      %1409 = vmatprep.subr.mxu0 0.0
      %1410 = vmatpush1.msra.mxu0 %v249
      %1411 = vmatprep.subr.mxu0 0.0
      %1412 = vmatpush1.msra.mxu0 %v250
      %1413 = vmatprep.subr.mxu0 0.0
      %1414 = vmatpush1.msra.mxu0 %v251
      %1415 = vmatprep.subr.mxu0 0.0
      %1416 = vmatpush1.msra.mxu0 %v252
      %1417 = vmatprep.subr.mxu0 0.0
      %1418 = vmatpush1.msra.mxu0 %v253
      %1419 = vmatprep.subr.mxu0 0.0
      %1420 = vmatpush1.msra.mxu0 0.0
      %1421 = vmatprep.subr.mxu0 0.0
      %1422 = vmatpush1.msra.mxu0 0.0
      %1423 = vmatprep.subr.mxu0 0.0
      %1424 = vmatpush1.msra.mxu0 0.0
      %1425 = vmatprep.subr.mxu0 0.0
      %1426 = vmatpush1.msra.mxu0 0.0
      %1427 = vmatprep.subr.mxu0 0.0
      %1428 = vmatpush1.msra.mxu0 0.0
      %1429 = vmatprep.subr.mxu0 0.0
      %1430 = vmatpush1.msra.mxu0 0.0
      %1431 = vmatprep.subr.mxu0 0.0
      %1432 = vmatpush1.msra.mxu0 0.0
      %1433 = vmatprep.subr.mxu0 0.0
      %1434 = vmatpush1.msra.mxu0 0.0
      %1435 = vmatprep.subr.mxu0 0.0
      %1436 = vmatpush1.msra.mxu0 0.0
      %1437 = vmatprep.subr.mxu0 0.0
      %1438 = vmatpush1.msra.mxu0 0.0
      %1439 = vmatprep.subr.mxu0 0.0
      %1440 = vmatpush1.msra.mxu0 0.0
      %1441 = vmatprep.subr.mxu0 0.0
      %1442 = vmatpush1.msra.mxu0 0.0
      %1443 = vmatprep.subr.mxu0 0.0
      %1444 = vmatpush1.msra.mxu0 0.0
      %1445 = vmatprep.subr.mxu0 0.0
      %1446 = vmatpush1.msra.mxu0 0.0
      %1447 = vmatprep.subr.mxu0 0.0
      %1448 = vmatpush1.msra.mxu0 0.0
      %1449 = vmatprep.subr.mxu0 0.0
      %1450 = vmatpush1.msra.mxu0 0.0
      %1451 = vmatprep.subr.mxu0 0.0
      %1452 = vmatpush1.msra.mxu0 0.0
      %1453 = vmatprep.subr.mxu0 0.0
      %1454 = vmatpush1.msra.mxu0 0.0
      %1455 = vmatprep.subr.mxu0 0.0
      %1456 = vmatpush1.msra.mxu0 0.0
      %1457 = vmatprep.subr.mxu0 0.0
      %1458 = vmatpush1.msra.mxu0 0.0
      %1459 = vmatprep.subr.mxu0 0.0
      %1460 = vmatpush1.msra.mxu0 0.0
      %1461 = vmatprep.subr.mxu0 0.0
      %1462 = vmatpush1.msra.mxu0 0.0
      %1463 = vmatprep.subr.mxu0 0.0
      %1464 = vmatpush1.msra.mxu0 0.0
      %1465 = vmatprep.subr.mxu0 0.0
      %1466 = vmatpush1.msra.mxu0 0.0
      %1467 = vmatprep.mubr.f32.mxu0 0.0
      %1468 = vmatmul.mubr.f32.gmra.mrb[0].mxu0 %v1392
      %v1469 = vpop.f32.mrb[0].mxu0
      %v1470 = vadd.f32 0.0, %v1469
      %v1471 = vpop.f32.mrb[0].mxu0
      %1472 = vmatprep.mubr.f32.mxu0 0.0
      %1473 = vmatmul.mubr.f32.gmra.mrb[0].mxu0 %v1395
      %v1474 = vpop.f32.mrb[0].mxu0
      %v1475 = vadd.f32 0.0, %v1474
      %v1476 = vpop.f32.mrb[0].mxu0
      %1477 = vmatprep.mubr.f32.mxu0 0.0
      %1478 = vmatmul.mubr.f32.gmra.mrb[0].mxu0 %v1398
      %v1479 = vpop.f32.mrb[0].mxu0
      %v1480 = vadd.f32 0.0, %v1479
      %v1481 = vpop.f32.mrb[0].mxu0
      %1482 = vmatprep.mubr.f32.mxu0 0.0
      %1483 = vmatmul.mubr.f32.gmra.mrb[0].mxu0 %v1401
      %v1484 = vpop.f32.mrb[0].mxu0
      %v1485 = vadd.f32 0.0, %v1484
      %v1486 = vpop.f32.mrb[0].mxu0
      %1487 = vdwg.mxu0
      %1488 = vst.msk [vmem:[#allocation2 + $0x8] sm:$0xff] %vm368, %v1470
      %1489 = vst.msk [vmem:[#allocation2 + $0x18] sm:$0xff] %vm368, %v1475
      %1490 = vst.msk [vmem:[#allocation2 + $0x28] sm:$0xff] %vm368, %v1480
      %1491 = vst.msk [vmem:[#allocation2 + $0x38] sm:$0xff] %vm368, %v1485
      %v1492 = vld [vmem:[%s225 + $0x20] sm:$0xff]
      %v1493 = vld [vmem:[%s225 + $0x60] sm:$0xff]
      %v1494 = vld [vmem:[%s225 + $0xa0] sm:$0xff]
      %v1495 = vld [vmem:[%s225 + $0xe0] sm:$0xff]
      %v1496 = vmul.f32 %v1492, %v382
      %v1497 = vmul.f32 %v1493, %v384
      %v1498 = vmul.f32 %v1494, %v386
      %v1499 = vmul.f32 %v1495, %v388
      %v1500 = vadd.f32 %v1496, %v402
      %v1501 = vadd.f32 %v1497, %v404
      %v1502 = vadd.f32 %v1498, %v406
      %v1503 = vadd.f32 %v1499, %v408
      %v1504 = vmax.f32 %v1500, 0.0
      %v1505 = vmax.f32 %v1501, 0.0
      %v1506 = vmax.f32 %v1502, 0.0
      %v1507 = vmax.f32 %v1503, 0.0
      %1512 = vrot.lane.b32.xlu0 %v1504, 64
      %v1513 = vpop.permute.xlu0 %1512
      %1514 = vrot.lane.b32.xlu0 %v1505, 64
      %v1515 = vpop.permute.xlu0 %1514
      %1516 = vrot.lane.b32.xlu0 %v1506, 64
      %v1517 = vpop.permute.xlu0 %1516
      %1518 = vrot.lane.b32.xlu0 %v1507, 64
      %v1519 = vpop.permute.xlu0 %1518
      %v1520 = vsel %vm270, %v1513, 0
      %v1522 = vsel %vm270, %v1515, 0
      %v1524 = vsel %vm270, %v1517, 0
      %v1526 = vsel %vm270, %v1519, 0
      %1528 = vmatprep.subr.mxu0 0.0
      %1529 = vmatpush1.msra.mxu0 %v246
      %1530 = vmatprep.subr.mxu0 0.0
      %1531 = vmatpush1.msra.mxu0 %v247
      %1532 = vmatprep.subr.mxu0 0.0
      %1533 = vmatpush1.msra.mxu0 %v248
      %1534 = vmatprep.subr.mxu0 0.0
      %1535 = vmatpush1.msra.mxu0 %v249
      %1536 = vmatprep.subr.mxu0 0.0
      %1537 = vmatpush1.msra.mxu0 %v250
      %1538 = vmatprep.subr.mxu0 0.0
      %1539 = vmatpush1.msra.mxu0 %v251
      %1540 = vmatprep.subr.mxu0 0.0
      %1541 = vmatpush1.msra.mxu0 %v252
      %1542 = vmatprep.subr.mxu0 0.0
      %1543 = vmatpush1.msra.mxu0 %v253
      %1544 = vmatprep.subr.mxu0 0.0
      %1545 = vmatpush1.msra.mxu0 0.0
      %1546 = vmatprep.subr.mxu0 0.0
      %1547 = vmatpush1.msra.mxu0 0.0
      %1548 = vmatprep.subr.mxu0 0.0
      %1549 = vmatpush1.msra.mxu0 0.0
      %1550 = vmatprep.subr.mxu0 0.0
      %1551 = vmatpush1.msra.mxu0 0.0
      %1552 = vmatprep.subr.mxu0 0.0
      %1553 = vmatpush1.msra.mxu0 0.0
      %1554 = vmatprep.subr.mxu0 0.0
      %1555 = vmatpush1.msra.mxu0 0.0
      %1556 = vmatprep.subr.mxu0 0.0
      %1557 = vmatpush1.msra.mxu0 0.0
      %1558 = vmatprep.subr.mxu0 0.0
      %1559 = vmatpush1.msra.mxu0 0.0
      %1560 = vmatprep.subr.mxu0 0.0
      %1561 = vmatpush1.msra.mxu0 0.0
      %1562 = vmatprep.subr.mxu0 0.0
      %1563 = vmatpush1.msra.mxu0 0.0
      %1564 = vmatprep.subr.mxu0 0.0
      %1565 = vmatpush1.msra.mxu0 0.0
      %1566 = vmatprep.subr.mxu0 0.0
      %1567 = vmatpush1.msra.mxu0 0.0
      %1568 = vmatprep.subr.mxu0 0.0
      %1569 = vmatpush1.msra.mxu0 0.0
      %1570 = vmatprep.subr.mxu0 0.0
      %1571 = vmatpush1.msra.mxu0 0.0
      %1572 = vmatprep.subr.mxu0 0.0
      %1573 = vmatpush1.msra.mxu0 0.0
      %1574 = vmatprep.subr.mxu0 0.0
      %1575 = vmatpush1.msra.mxu0 0.0
      %1576 = vmatprep.subr.mxu0 0.0
      %1577 = vmatpush1.msra.mxu0 0.0
      %1578 = vmatprep.subr.mxu0 0.0
      %1579 = vmatpush1.msra.mxu0 0.0
      %1580 = vmatprep.subr.mxu0 0.0
      %1581 = vmatpush1.msra.mxu0 0.0
      %1582 = vmatprep.subr.mxu0 0.0
      %1583 = vmatpush1.msra.mxu0 0.0
      %1584 = vmatprep.subr.mxu0 0.0
      %1585 = vmatpush1.msra.mxu0 0.0
      %1586 = vmatprep.subr.mxu0 0.0
      %1587 = vmatpush1.msra.mxu0 0.0
      %1588 = vmatprep.subr.mxu0 0.0
      %1589 = vmatpush1.msra.mxu0 0.0
      %1590 = vmatprep.subr.mxu0 0.0
      %1591 = vmatpush1.msra.mxu0 0.0
      %1592 = vmatprep.mubr.f32.mxu0 0.0
      %1593 = vmatmul.mubr.f32.gmra.mrb[0].mxu0 %v1520
      %v1594 = vpop.f32.mrb[0].mxu0
      %v1595 = vadd.f32 0.0, %v1594
      %v1596 = vpop.f32.mrb[0].mxu0
      %1597 = vmatprep.mubr.f32.mxu0 0.0
      %1598 = vmatmul.mubr.f32.gmra.mrb[0].mxu0 %v1522
      %v1599 = vpop.f32.mrb[0].mxu0
      %v1600 = vadd.f32 0.0, %v1599
      %v1601 = vpop.f32.mrb[0].mxu0
      %1602 = vmatprep.mubr.f32.mxu0 0.0
      %1603 = vmatmul.mubr.f32.gmra.mrb[0].mxu0 %v1524
      %v1604 = vpop.f32.mrb[0].mxu0
      %v1605 = vadd.f32 0.0, %v1604
      %v1606 = vpop.f32.mrb[0].mxu0
      %1607 = vmatprep.mubr.f32.mxu0 0.0
      %1608 = vmatmul.mubr.f32.gmra.mrb[0].mxu0 %v1526
      %v1609 = vpop.f32.mrb[0].mxu0
      %v1610 = vadd.f32 0.0, %v1609
      %v1611 = vpop.f32.mrb[0].mxu0
      %1612 = vdwg.mxu0
      %1617 = vrot.lane.b32.xlu0 %v1595, 16
      %v1618 = vpop.permute.xlu0 %1617
      %1619 = vrot.lane.b32.xlu0 %v1600, 16
      %v1620 = vpop.permute.xlu0 %1619
      %1621 = vrot.lane.b32.xlu0 %v1605, 16
      %v1622 = vpop.permute.xlu0 %1621
      %1623 = vrot.lane.b32.xlu0 %v1610, 16
      %v1624 = vpop.permute.xlu0 %1623
      %1629 = vst.msk [vmem:[#allocation2 + $0x8] sm:$0xff] %vm542, %v1618
      %1630 = vst.msk [vmem:[#allocation2 + $0x18] sm:$0xff] %vm542, %v1620
      %1631 = vst.msk [vmem:[#allocation2 + $0x28] sm:$0xff] %vm542, %v1622
      %1632 = vst.msk [vmem:[#allocation2 + $0x38] sm:$0xff] %vm542, %v1624
      %v1633 = vld [vmem:[%s225 + $0x28] sm:$0xff]
      %v1634 = vld [vmem:[%s225 + $0x68] sm:$0xff]
      %v1635 = vld [vmem:[%s225 + $0xa8] sm:$0xff]
      %v1636 = vld [vmem:[%s225 + $0xe8] sm:$0xff]
      %v1637 = vmul.f32 %v1633, %v237
      %v1638 = vmul.f32 %v1634, %v238
      %v1639 = vmul.f32 %v1635, %v239
      %v1640 = vmul.f32 %v1636, %v240
      %v1641 = vadd.f32 %v1637, %v242
      %v1642 = vadd.f32 %v1638, %v243
      %v1643 = vadd.f32 %v1639, %v244
      %v1644 = vadd.f32 %v1640, %v245
      %v1645 = vmax.f32 %v1641, 0.0
      %v1646 = vmax.f32 %v1642, 0.0
      %v1647 = vmax.f32 %v1643, 0.0
      %v1648 = vmax.f32 %v1644, 0.0
      %v1650 = vsel %vm270, %v1645, 0
      %v1653 = vsel %vm270, %v1646, 0
      %v1656 = vsel %vm270, %v1647, 0
      %v1659 = vsel %vm270, %v1648, 0
      %1661 = vmatprep.subr.mxu0 0.0
      %1662 = vmatpush1.msra.mxu0 %v246
      %1663 = vmatprep.subr.mxu0 0.0
      %1664 = vmatpush1.msra.mxu0 %v247
      %1665 = vmatprep.subr.mxu0 0.0
      %1666 = vmatpush1.msra.mxu0 %v248
      %1667 = vmatprep.subr.mxu0 0.0
      %1668 = vmatpush1.msra.mxu0 %v249
      %1669 = vmatprep.subr.mxu0 0.0
      %1670 = vmatpush1.msra.mxu0 %v250
      %1671 = vmatprep.subr.mxu0 0.0
      %1672 = vmatpush1.msra.mxu0 %v251
      %1673 = vmatprep.subr.mxu0 0.0
      %1674 = vmatpush1.msra.mxu0 %v252
      %1675 = vmatprep.subr.mxu0 0.0
      %1676 = vmatpush1.msra.mxu0 %v253
      %1677 = vmatprep.subr.mxu0 0.0
      %1678 = vmatpush1.msra.mxu0 0.0
      %1679 = vmatprep.subr.mxu0 0.0
      %1680 = vmatpush1.msra.mxu0 0.0
      %1681 = vmatprep.subr.mxu0 0.0
      %1682 = vmatpush1.msra.mxu0 0.0
      %1683 = vmatprep.subr.mxu0 0.0
      %1684 = vmatpush1.msra.mxu0 0.0
      %1685 = vmatprep.subr.mxu0 0.0
      %1686 = vmatpush1.msra.mxu0 0.0
      %1687 = vmatprep.subr.mxu0 0.0
      %1688 = vmatpush1.msra.mxu0 0.0
      %1689 = vmatprep.subr.mxu0 0.0
      %1690 = vmatpush1.msra.mxu0 0.0
      %1691 = vmatprep.subr.mxu0 0.0
      %1692 = vmatpush1.msra.mxu0 0.0
      %1693 = vmatprep.subr.mxu0 0.0
      %1694 = vmatpush1.msra.mxu0 0.0
      %1695 = vmatprep.subr.mxu0 0.0
      %1696 = vmatpush1.msra.mxu0 0.0
      %1697 = vmatprep.subr.mxu0 0.0
      %1698 = vmatpush1.msra.mxu0 0.0
      %1699 = vmatprep.subr.mxu0 0.0
      %1700 = vmatpush1.msra.mxu0 0.0
      %1701 = vmatprep.subr.mxu0 0.0
      %1702 = vmatpush1.msra.mxu0 0.0
      %1703 = vmatprep.subr.mxu0 0.0
      %1704 = vmatpush1.msra.mxu0 0.0
      %1705 = vmatprep.subr.mxu0 0.0
      %1706 = vmatpush1.msra.mxu0 0.0
      %1707 = vmatprep.subr.mxu0 0.0
      %1708 = vmatpush1.msra.mxu0 0.0
      %1709 = vmatprep.subr.mxu0 0.0
      %1710 = vmatpush1.msra.mxu0 0.0
      %1711 = vmatprep.subr.mxu0 0.0
      %1712 = vmatpush1.msra.mxu0 0.0
      %1713 = vmatprep.subr.mxu0 0.0
      %1714 = vmatpush1.msra.mxu0 0.0
      %1715 = vmatprep.subr.mxu0 0.0
      %1716 = vmatpush1.msra.mxu0 0.0
      %1717 = vmatprep.subr.mxu0 0.0
      %1718 = vmatpush1.msra.mxu0 0.0
      %1719 = vmatprep.subr.mxu0 0.0
      %1720 = vmatpush1.msra.mxu0 0.0
      %1721 = vmatprep.subr.mxu0 0.0
      %1722 = vmatpush1.msra.mxu0 0.0
      %1723 = vmatprep.subr.mxu0 0.0
      %1724 = vmatpush1.msra.mxu0 0.0
      %1725 = vmatprep.mubr.f32.mxu0 0.0
      %1726 = vmatmul.mubr.f32.gmra.mrb[0].mxu0 %v1650
      %v1727 = vpop.f32.mrb[0].mxu0
      %v1728 = vadd.f32 0.0, %v1727
      %v1729 = vpop.f32.mrb[0].mxu0
      %1730 = vmatprep.mubr.f32.mxu0 0.0
      %1731 = vmatmul.mubr.f32.gmra.mrb[0].mxu0 %v1653
      %v1732 = vpop.f32.mrb[0].mxu0
      %v1733 = vadd.f32 0.0, %v1732
      %v1734 = vpop.f32.mrb[0].mxu0
      %1735 = vmatprep.mubr.f32.mxu0 0.0
      %1736 = vmatmul.mubr.f32.gmra.mrb[0].mxu0 %v1656
      %v1737 = vpop.f32.mrb[0].mxu0
      %v1738 = vadd.f32 0.0, %v1737
      %v1739 = vpop.f32.mrb[0].mxu0
      %1740 = vmatprep.mubr.f32.mxu0 0.0
      %1741 = vmatmul.mubr.f32.gmra.mrb[0].mxu0 %v1659
      %v1742 = vpop.f32.mrb[0].mxu0
      %v1743 = vadd.f32 0.0, %v1742
      %v1744 = vpop.f32.mrb[0].mxu0
      %1745 = vdwg.mxu0
      %1750 = vrot.lane.b32.xlu0 %v1728, 32
      %v1751 = vpop.permute.xlu0 %1750
      %1752 = vrot.lane.b32.xlu0 %v1733, 32
      %v1753 = vpop.permute.xlu0 %1752
      %1754 = vrot.lane.b32.xlu0 %v1738, 32
      %v1755 = vpop.permute.xlu0 %1754
      %1756 = vrot.lane.b32.xlu0 %v1743, 32
      %v1757 = vpop.permute.xlu0 %1756
      %1762 = vst.msk [vmem:[#allocation2 + $0x8] sm:$0xff] %vm676, %v1751
      %1763 = vst.msk [vmem:[#allocation2 + $0x18] sm:$0xff] %vm676, %v1753
      %1764 = vst.msk [vmem:[#allocation2 + $0x28] sm:$0xff] %vm676, %v1755
      %1765 = vst.msk [vmem:[#allocation2 + $0x38] sm:$0xff] %vm676, %v1757
      %v1766 = vld [vmem:[%s225 + $0x28] sm:$0xff]
      %v1767 = vld [vmem:[%s225 + $0x68] sm:$0xff]
      %v1768 = vld [vmem:[%s225 + $0xa8] sm:$0xff]
      %v1769 = vld [vmem:[%s225 + $0xe8] sm:$0xff]
      %v1770 = vmul.f32 %v1766, %v382
      %v1771 = vmul.f32 %v1767, %v384
      %v1772 = vmul.f32 %v1768, %v386
      %v1773 = vmul.f32 %v1769, %v388
      %v1774 = vadd.f32 %v1770, %v402
      %v1775 = vadd.f32 %v1771, %v404
      %v1776 = vadd.f32 %v1772, %v406
      %v1777 = vadd.f32 %v1773, %v408
      %v1778 = vmax.f32 %v1774, 0.0
      %v1779 = vmax.f32 %v1775, 0.0
      %v1780 = vmax.f32 %v1776, 0.0
      %v1781 = vmax.f32 %v1777, 0.0
      %1786 = vrot.lane.b32.xlu0 %v1778, 64
      %v1787 = vpop.permute.xlu0 %1786
      %1788 = vrot.lane.b32.xlu0 %v1779, 64
      %v1789 = vpop.permute.xlu0 %1788
      %1790 = vrot.lane.b32.xlu0 %v1780, 64
      %v1791 = vpop.permute.xlu0 %1790
      %1792 = vrot.lane.b32.xlu0 %v1781, 64
      %v1793 = vpop.permute.xlu0 %1792
      %v1794 = vsel %vm270, %v1787, 0
      %v1796 = vsel %vm270, %v1789, 0
      %v1798 = vsel %vm270, %v1791, 0
      %v1800 = vsel %vm270, %v1793, 0
      %1802 = vmatprep.subr.mxu0 0.0
      %1803 = vmatpush1.msra.mxu0 %v246
      %1804 = vmatprep.subr.mxu0 0.0
      %1805 = vmatpush1.msra.mxu0 %v247
      %1806 = vmatprep.subr.mxu0 0.0
      %1807 = vmatpush1.msra.mxu0 %v248
      %1808 = vmatprep.subr.mxu0 0.0
      %1809 = vmatpush1.msra.mxu0 %v249
      %1810 = vmatprep.subr.mxu0 0.0
      %1811 = vmatpush1.msra.mxu0 %v250
      %1812 = vmatprep.subr.mxu0 0.0
      %1813 = vmatpush1.msra.mxu0 %v251
      %1814 = vmatprep.subr.mxu0 0.0
      %1815 = vmatpush1.msra.mxu0 %v252
      %1816 = vmatprep.subr.mxu0 0.0
      %1817 = vmatpush1.msra.mxu0 %v253
      %1818 = vmatprep.subr.mxu0 0.0
      %1819 = vmatpush1.msra.mxu0 0.0
      %1820 = vmatprep.subr.mxu0 0.0
      %1821 = vmatpush1.msra.mxu0 0.0
      %1822 = vmatprep.subr.mxu0 0.0
      %1823 = vmatpush1.msra.mxu0 0.0
      %1824 = vmatprep.subr.mxu0 0.0
      %1825 = vmatpush1.msra.mxu0 0.0
      %1826 = vmatprep.subr.mxu0 0.0
      %1827 = vmatpush1.msra.mxu0 0.0
      %1828 = vmatprep.subr.mxu0 0.0
      %1829 = vmatpush1.msra.mxu0 0.0
      %1830 = vmatprep.subr.mxu0 0.0
      %1831 = vmatpush1.msra.mxu0 0.0
      %1832 = vmatprep.subr.mxu0 0.0
      %1833 = vmatpush1.msra.mxu0 0.0
      %1834 = vmatprep.subr.mxu0 0.0
      %1835 = vmatpush1.msra.mxu0 0.0
      %1836 = vmatprep.subr.mxu0 0.0
      %1837 = vmatpush1.msra.mxu0 0.0
      %1838 = vmatprep.subr.mxu0 0.0
      %1839 = vmatpush1.msra.mxu0 0.0
      %1840 = vmatprep.subr.mxu0 0.0
      %1841 = vmatpush1.msra.mxu0 0.0
      %1842 = vmatprep.subr.mxu0 0.0
      %1843 = vmatpush1.msra.mxu0 0.0
      %1844 = vmatprep.subr.mxu0 0.0
      %1845 = vmatpush1.msra.mxu0 0.0
      %1846 = vmatprep.subr.mxu0 0.0
      %1847 = vmatpush1.msra.mxu0 0.0
      %1848 = vmatprep.subr.mxu0 0.0
      %1849 = vmatpush1.msra.mxu0 0.0
      %1850 = vmatprep.subr.mxu0 0.0
      %1851 = vmatpush1.msra.mxu0 0.0
      %1852 = vmatprep.subr.mxu0 0.0
      %1853 = vmatpush1.msra.mxu0 0.0
      %1854 = vmatprep.subr.mxu0 0.0
      %1855 = vmatpush1.msra.mxu0 0.0
      %1856 = vmatprep.subr.mxu0 0.0
      %1857 = vmatpush1.msra.mxu0 0.0
      %1858 = vmatprep.subr.mxu0 0.0
      %1859 = vmatpush1.msra.mxu0 0.0
      %1860 = vmatprep.subr.mxu0 0.0
      %1861 = vmatpush1.msra.mxu0 0.0
      %1862 = vmatprep.subr.mxu0 0.0
      %1863 = vmatpush1.msra.mxu0 0.0
      %1864 = vmatprep.subr.mxu0 0.0
      %1865 = vmatpush1.msra.mxu0 0.0
      %1866 = vmatprep.mubr.f32.mxu0 0.0
      %1867 = vmatmul.mubr.f32.gmra.mrb[0].mxu0 %v1794
      %v1868 = vpop.f32.mrb[0].mxu0
      %v1869 = vadd.f32 0.0, %v1868
      %v1870 = vpop.f32.mrb[0].mxu0
      %1871 = vmatprep.mubr.f32.mxu0 0.0
      %1872 = vmatmul.mubr.f32.gmra.mrb[0].mxu0 %v1796
      %v1873 = vpop.f32.mrb[0].mxu0
      %v1874 = vadd.f32 0.0, %v1873
      %v1875 = vpop.f32.mrb[0].mxu0
      %1876 = vmatprep.mubr.f32.mxu0 0.0
      %1877 = vmatmul.mubr.f32.gmra.mrb[0].mxu0 %v1798
      %v1878 = vpop.f32.mrb[0].mxu0
      %v1879 = vadd.f32 0.0, %v1878
      %v1880 = vpop.f32.mrb[0].mxu0
      %1881 = vmatprep.mubr.f32.mxu0 0.0
      %1882 = vmatmul.mubr.f32.gmra.mrb[0].mxu0 %v1800
      %v1883 = vpop.f32.mrb[0].mxu0
      %v1884 = vadd.f32 0.0, %v1883
      %v1885 = vpop.f32.mrb[0].mxu0
      %1886 = vdwg.mxu0
      %1891 = vrot.lane.b32.xlu0 %v1869, 48
      %v1892 = vpop.permute.xlu0 %1891
      %1893 = vrot.lane.b32.xlu0 %v1874, 48
      %v1894 = vpop.permute.xlu0 %1893
      %1895 = vrot.lane.b32.xlu0 %v1879, 48
      %v1896 = vpop.permute.xlu0 %1895
      %1897 = vrot.lane.b32.xlu0 %v1884, 48
      %v1898 = vpop.permute.xlu0 %1897
      %1903 = vst.msk [vmem:[#allocation2 + $0x8] sm:$0xff] %vm818, %v1892
      %1904 = vst.msk [vmem:[#allocation2 + $0x18] sm:$0xff] %vm818, %v1894
      %1905 = vst.msk [vmem:[#allocation2 + $0x28] sm:$0xff] %vm818, %v1896
      %1906 = vst.msk [vmem:[#allocation2 + $0x38] sm:$0xff] %vm818, %v1898
      %v1907 = vld [vmem:[%s225 + $0x30] sm:$0xff]
      %v1908 = vld [vmem:[%s225 + $0x70] sm:$0xff]
      %v1909 = vld [vmem:[%s225 + $0xb0] sm:$0xff]
      %v1910 = vld [vmem:[%s225 + $0xf0] sm:$0xff]
      %v1911 = vmul.f32 %v1907, %v237
      %v1912 = vmul.f32 %v1908, %v238
      %v1913 = vmul.f32 %v1909, %v239
      %v1914 = vmul.f32 %v1910, %v240
      %v1915 = vadd.f32 %v1911, %v242
      %v1916 = vadd.f32 %v1912, %v243
      %v1917 = vadd.f32 %v1913, %v244
      %v1918 = vadd.f32 %v1914, %v245
      %v1919 = vmax.f32 %v1915, 0.0
      %v1920 = vmax.f32 %v1916, 0.0
      %v1921 = vmax.f32 %v1917, 0.0
      %v1922 = vmax.f32 %v1918, 0.0
      %v1924 = vsel %vm270, %v1919, 0
      %v1927 = vsel %vm270, %v1920, 0
      %v1930 = vsel %vm270, %v1921, 0
      %v1933 = vsel %vm270, %v1922, 0
      %1935 = vmatprep.subr.mxu0 0.0
      %1936 = vmatpush1.msra.mxu0 %v246
      %1937 = vmatprep.subr.mxu0 0.0
      %1938 = vmatpush1.msra.mxu0 %v247
      %1939 = vmatprep.subr.mxu0 0.0
      %1940 = vmatpush1.msra.mxu0 %v248
      %1941 = vmatprep.subr.mxu0 0.0
      %1942 = vmatpush1.msra.mxu0 %v249
      %1943 = vmatprep.subr.mxu0 0.0
      %1944 = vmatpush1.msra.mxu0 %v250
      %1945 = vmatprep.subr.mxu0 0.0
      %1946 = vmatpush1.msra.mxu0 %v251
      %1947 = vmatprep.subr.mxu0 0.0
      %1948 = vmatpush1.msra.mxu0 %v252
      %1949 = vmatprep.subr.mxu0 0.0
      %1950 = vmatpush1.msra.mxu0 %v253
      %1951 = vmatprep.subr.mxu0 0.0
      %1952 = vmatpush1.msra.mxu0 0.0
      %1953 = vmatprep.subr.mxu0 0.0
      %1954 = vmatpush1.msra.mxu0 0.0
      %1955 = vmatprep.subr.mxu0 0.0
      %1956 = vmatpush1.msra.mxu0 0.0
      %1957 = vmatprep.subr.mxu0 0.0
      %1958 = vmatpush1.msra.mxu0 0.0
      %1959 = vmatprep.subr.mxu0 0.0
      %1960 = vmatpush1.msra.mxu0 0.0
      %1961 = vmatprep.subr.mxu0 0.0
      %1962 = vmatpush1.msra.mxu0 0.0
      %1963 = vmatprep.subr.mxu0 0.0
      %1964 = vmatpush1.msra.mxu0 0.0
      %1965 = vmatprep.subr.mxu0 0.0
      %1966 = vmatpush1.msra.mxu0 0.0
      %1967 = vmatprep.subr.mxu0 0.0
      %1968 = vmatpush1.msra.mxu0 0.0
      %1969 = vmatprep.subr.mxu0 0.0
      %1970 = vmatpush1.msra.mxu0 0.0
      %1971 = vmatprep.subr.mxu0 0.0
      %1972 = vmatpush1.msra.mxu0 0.0
      %1973 = vmatprep.subr.mxu0 0.0
      %1974 = vmatpush1.msra.mxu0 0.0
      %1975 = vmatprep.subr.mxu0 0.0
      %1976 = vmatpush1.msra.mxu0 0.0
      %1977 = vmatprep.subr.mxu0 0.0
      %1978 = vmatpush1.msra.mxu0 0.0
      %1979 = vmatprep.subr.mxu0 0.0
      %1980 = vmatpush1.msra.mxu0 0.0
      %1981 = vmatprep.subr.mxu0 0.0
      %1982 = vmatpush1.msra.mxu0 0.0
      %1983 = vmatprep.subr.mxu0 0.0
      %1984 = vmatpush1.msra.mxu0 0.0
      %1985 = vmatprep.subr.mxu0 0.0
      %1986 = vmatpush1.msra.mxu0 0.0
      %1987 = vmatprep.subr.mxu0 0.0
      %1988 = vmatpush1.msra.mxu0 0.0
      %1989 = vmatprep.subr.mxu0 0.0
      %1990 = vmatpush1.msra.mxu0 0.0
      %1991 = vmatprep.subr.mxu0 0.0
      %1992 = vmatpush1.msra.mxu0 0.0
      %1993 = vmatprep.subr.mxu0 0.0
      %1994 = vmatpush1.msra.mxu0 0.0
      %1995 = vmatprep.subr.mxu0 0.0
      %1996 = vmatpush1.msra.mxu0 0.0
      %1997 = vmatprep.subr.mxu0 0.0
      %1998 = vmatpush1.msra.mxu0 0.0
      %1999 = vmatprep.mubr.f32.mxu0 0.0
      %2000 = vmatmul.mubr.f32.gmra.mrb[0].mxu0 %v1924
      %v2001 = vpop.f32.mrb[0].mxu0
      %v2002 = vadd.f32 0.0, %v2001
      %v2003 = vpop.f32.mrb[0].mxu0
      %2004 = vmatprep.mubr.f32.mxu0 0.0
      %2005 = vmatmul.mubr.f32.gmra.mrb[0].mxu0 %v1927
      %v2006 = vpop.f32.mrb[0].mxu0
      %v2007 = vadd.f32 0.0, %v2006
      %v2008 = vpop.f32.mrb[0].mxu0
      %2009 = vmatprep.mubr.f32.mxu0 0.0
      %2010 = vmatmul.mubr.f32.gmra.mrb[0].mxu0 %v1930
      %v2011 = vpop.f32.mrb[0].mxu0
      %v2012 = vadd.f32 0.0, %v2011
      %v2013 = vpop.f32.mrb[0].mxu0
      %2014 = vmatprep.mubr.f32.mxu0 0.0
      %2015 = vmatmul.mubr.f32.gmra.mrb[0].mxu0 %v1933
      %v2016 = vpop.f32.mrb[0].mxu0
      %v2017 = vadd.f32 0.0, %v2016
      %v2018 = vpop.f32.mrb[0].mxu0
      %2019 = vdwg.mxu0
      %2024 = vrot.lane.b32.xlu0 %v2002, 64
      %v2025 = vpop.permute.xlu0 %2024
      %2026 = vrot.lane.b32.xlu0 %v2007, 64
      %v2027 = vpop.permute.xlu0 %2026
      %2028 = vrot.lane.b32.xlu0 %v2012, 64
      %v2029 = vpop.permute.xlu0 %2028
      %2030 = vrot.lane.b32.xlu0 %v2017, 64
      %v2031 = vpop.permute.xlu0 %2030
      %2036 = vst.msk [vmem:[#allocation2 + $0x8] sm:$0xff] %vm952, %v2025
      %2037 = vst.msk [vmem:[#allocation2 + $0x18] sm:$0xff] %vm952, %v2027
      %2038 = vst.msk [vmem:[#allocation2 + $0x28] sm:$0xff] %vm952, %v2029
      %2039 = vst.msk [vmem:[#allocation2 + $0x38] sm:$0xff] %vm952, %v2031
      %v2040 = vld [vmem:[%s225 + $0x30] sm:$0xff]
      %v2041 = vld [vmem:[%s225 + $0x70] sm:$0xff]
      %v2042 = vld [vmem:[%s225 + $0xb0] sm:$0xff]
      %v2043 = vld [vmem:[%s225 + $0xf0] sm:$0xff]
      %v2044 = vmul.f32 %v2040, %v382
      %v2045 = vmul.f32 %v2041, %v384
      %v2046 = vmul.f32 %v2042, %v386
      %v2047 = vmul.f32 %v2043, %v388
      %v2048 = vadd.f32 %v2044, %v402
      %v2049 = vadd.f32 %v2045, %v404
      %v2050 = vadd.f32 %v2046, %v406
      %v2051 = vadd.f32 %v2047, %v408
      %v2052 = vmax.f32 %v2048, 0.0
      %v2053 = vmax.f32 %v2049, 0.0
      %v2054 = vmax.f32 %v2050, 0.0
      %v2055 = vmax.f32 %v2051, 0.0
      %2060 = vrot.lane.b32.xlu0 %v2052, 64
      %v2061 = vpop.permute.xlu0 %2060
      %2062 = vrot.lane.b32.xlu0 %v2053, 64
      %v2063 = vpop.permute.xlu0 %2062
      %2064 = vrot.lane.b32.xlu0 %v2054, 64
      %v2065 = vpop.permute.xlu0 %2064
      %2066 = vrot.lane.b32.xlu0 %v2055, 64
      %v2067 = vpop.permute.xlu0 %2066
      %v2068 = vsel %vm270, %v2061, 0
      %v2070 = vsel %vm270, %v2063, 0
      %v2072 = vsel %vm270, %v2065, 0
      %v2074 = vsel %vm270, %v2067, 0
      %2076 = vmatprep.subr.mxu0 0.0
      %2077 = vmatpush1.msra.mxu0 %v246
      %2078 = vmatprep.subr.mxu0 0.0
      %2079 = vmatpush1.msra.mxu0 %v247
      %2080 = vmatprep.subr.mxu0 0.0
      %2081 = vmatpush1.msra.mxu0 %v248
      %2082 = vmatprep.subr.mxu0 0.0
      %2083 = vmatpush1.msra.mxu0 %v249
      %2084 = vmatprep.subr.mxu0 0.0
      %2085 = vmatpush1.msra.mxu0 %v250
      %2086 = vmatprep.subr.mxu0 0.0
      %2087 = vmatpush1.msra.mxu0 %v251
      %2088 = vmatprep.subr.mxu0 0.0
      %2089 = vmatpush1.msra.mxu0 %v252
      %2090 = vmatprep.subr.mxu0 0.0
      %2091 = vmatpush1.msra.mxu0 %v253
      %2092 = vmatprep.subr.mxu0 0.0
      %2093 = vmatpush1.msra.mxu0 0.0
      %2094 = vmatprep.subr.mxu0 0.0
      %2095 = vmatpush1.msra.mxu0 0.0
      %2096 = vmatprep.subr.mxu0 0.0
      %2097 = vmatpush1.msra.mxu0 0.0
      %2098 = vmatprep.subr.mxu0 0.0
      %2099 = vmatpush1.msra.mxu0 0.0
      %2100 = vmatprep.subr.mxu0 0.0
      %2101 = vmatpush1.msra.mxu0 0.0
      %2102 = vmatprep.subr.mxu0 0.0
      %2103 = vmatpush1.msra.mxu0 0.0
      %2104 = vmatprep.subr.mxu0 0.0
      %2105 = vmatpush1.msra.mxu0 0.0
      %2106 = vmatprep.subr.mxu0 0.0
      %2107 = vmatpush1.msra.mxu0 0.0
      %2108 = vmatprep.subr.mxu0 0.0
      %2109 = vmatpush1.msra.mxu0 0.0
      %2110 = vmatprep.subr.mxu0 0.0
      %2111 = vmatpush1.msra.mxu0 0.0
      %2112 = vmatprep.subr.mxu0 0.0
      %2113 = vmatpush1.msra.mxu0 0.0
      %2114 = vmatprep.subr.mxu0 0.0
      %2115 = vmatpush1.msra.mxu0 0.0
      %2116 = vmatprep.subr.mxu0 0.0
      %2117 = vmatpush1.msra.mxu0 0.0
      %2118 = vmatprep.subr.mxu0 0.0
      %2119 = vmatpush1.msra.mxu0 0.0
      %2120 = vmatprep.subr.mxu0 0.0
      %2121 = vmatpush1.msra.mxu0 0.0
      %2122 = vmatprep.subr.mxu0 0.0
      %2123 = vmatpush1.msra.mxu0 0.0
      %2124 = vmatprep.subr.mxu0 0.0
      %2125 = vmatpush1.msra.mxu0 0.0
      %2126 = vmatprep.subr.mxu0 0.0
      %2127 = vmatpush1.msra.mxu0 0.0
      %2128 = vmatprep.subr.mxu0 0.0
      %2129 = vmatpush1.msra.mxu0 0.0
      %2130 = vmatprep.subr.mxu0 0.0
      %2131 = vmatpush1.msra.mxu0 0.0
      %2132 = vmatprep.subr.mxu0 0.0
      %2133 = vmatpush1.msra.mxu0 0.0
      %2134 = vmatprep.subr.mxu0 0.0
      %2135 = vmatpush1.msra.mxu0 0.0
      %2136 = vmatprep.subr.mxu0 0.0
      %2137 = vmatpush1.msra.mxu0 0.0
      %2138 = vmatprep.subr.mxu0 0.0
      %2139 = vmatpush1.msra.mxu0 0.0
      %2140 = vmatprep.mubr.f32.mxu0 0.0
      %2141 = vmatmul.mubr.f32.gmra.mrb[0].mxu0 %v2068
      %v2142 = vpop.f32.mrb[0].mxu0
      %v2143 = vadd.f32 0.0, %v2142
      %v2144 = vpop.f32.mrb[0].mxu0
      %2145 = vmatprep.mubr.f32.mxu0 0.0
      %2146 = vmatmul.mubr.f32.gmra.mrb[0].mxu0 %v2070
      %v2147 = vpop.f32.mrb[0].mxu0
      %v2148 = vadd.f32 0.0, %v2147
      %v2149 = vpop.f32.mrb[0].mxu0
      %2150 = vmatprep.mubr.f32.mxu0 0.0
      %2151 = vmatmul.mubr.f32.gmra.mrb[0].mxu0 %v2072
      %v2152 = vpop.f32.mrb[0].mxu0
      %v2153 = vadd.f32 0.0, %v2152
      %v2154 = vpop.f32.mrb[0].mxu0
      %2155 = vmatprep.mubr.f32.mxu0 0.0
      %2156 = vmatmul.mubr.f32.gmra.mrb[0].mxu0 %v2074
      %v2157 = vpop.f32.mrb[0].mxu0
      %v2158 = vadd.f32 0.0, %v2157
      %v2159 = vpop.f32.mrb[0].mxu0
      %2160 = vdwg.mxu0
      %2165 = vrot.lane.b32.xlu0 %v2143, 80
      %v2166 = vpop.permute.xlu0 %2165
      %2167 = vrot.lane.b32.xlu0 %v2148, 80
      %v2168 = vpop.permute.xlu0 %2167
      %2169 = vrot.lane.b32.xlu0 %v2153, 80
      %v2170 = vpop.permute.xlu0 %2169
      %2171 = vrot.lane.b32.xlu0 %v2158, 80
      %v2172 = vpop.permute.xlu0 %2171
      %2177 = vst.msk [vmem:[#allocation2 + $0x8] sm:$0xff] %vm1094, %v2166
      %2178 = vst.msk [vmem:[#allocation2 + $0x18] sm:$0xff] %vm1094, %v2168
      %2179 = vst.msk [vmem:[#allocation2 + $0x28] sm:$0xff] %vm1094, %v2170
      %2180 = vst.msk [vmem:[#allocation2 + $0x38] sm:$0xff] %vm1094, %v2172
      %v2181 = vld [vmem:[%s225 + $0x38] sm:$0xff]
      %v2182 = vld [vmem:[%s225 + $0x78] sm:$0xff]
      %v2183 = vld [vmem:[%s225 + $0xb8] sm:$0xff]
      %v2184 = vld [vmem:[%s225 + $0xf8] sm:$0xff]
      %v2185 = vmul.f32 %v2181, %v237
      %v2186 = vmul.f32 %v2182, %v238
      %v2187 = vmul.f32 %v2183, %v239
      %v2188 = vmul.f32 %v2184, %v240
      %v2189 = vadd.f32 %v2185, %v242
      %v2190 = vadd.f32 %v2186, %v243
      %v2191 = vadd.f32 %v2187, %v244
      %v2192 = vadd.f32 %v2188, %v245
      %v2193 = vmax.f32 %v2189, 0.0
      %v2194 = vmax.f32 %v2190, 0.0
      %v2195 = vmax.f32 %v2191, 0.0
      %v2196 = vmax.f32 %v2192, 0.0
      %v2198 = vsel %vm270, %v2193, 0
      %v2201 = vsel %vm270, %v2194, 0
      %v2204 = vsel %vm270, %v2195, 0
      %v2207 = vsel %vm270, %v2196, 0
      %2209 = vmatprep.subr.mxu0 0.0
      %2210 = vmatpush1.msra.mxu0 %v246
      %2211 = vmatprep.subr.mxu0 0.0
      %2212 = vmatpush1.msra.mxu0 %v247
      %2213 = vmatprep.subr.mxu0 0.0
      %2214 = vmatpush1.msra.mxu0 %v248
      %2215 = vmatprep.subr.mxu0 0.0
      %2216 = vmatpush1.msra.mxu0 %v249
      %2217 = vmatprep.subr.mxu0 0.0
      %2218 = vmatpush1.msra.mxu0 %v250
      %2219 = vmatprep.subr.mxu0 0.0
      %2220 = vmatpush1.msra.mxu0 %v251
      %2221 = vmatprep.subr.mxu0 0.0
      %2222 = vmatpush1.msra.mxu0 %v252
      %2223 = vmatprep.subr.mxu0 0.0
      %2224 = vmatpush1.msra.mxu0 %v253
      %2225 = vmatprep.subr.mxu0 0.0
      %2226 = vmatpush1.msra.mxu0 0.0
      %2227 = vmatprep.subr.mxu0 0.0
      %2228 = vmatpush1.msra.mxu0 0.0
      %2229 = vmatprep.subr.mxu0 0.0
      %2230 = vmatpush1.msra.mxu0 0.0
      %2231 = vmatprep.subr.mxu0 0.0
      %2232 = vmatpush1.msra.mxu0 0.0
      %2233 = vmatprep.subr.mxu0 0.0
      %2234 = vmatpush1.msra.mxu0 0.0
      %2235 = vmatprep.subr.mxu0 0.0
      %2236 = vmatpush1.msra.mxu0 0.0
      %2237 = vmatprep.subr.mxu0 0.0
      %2238 = vmatpush1.msra.mxu0 0.0
      %2239 = vmatprep.subr.mxu0 0.0
      %2240 = vmatpush1.msra.mxu0 0.0
      %2241 = vmatprep.subr.mxu0 0.0
      %2242 = vmatpush1.msra.mxu0 0.0
      %2243 = vmatprep.subr.mxu0 0.0
      %2244 = vmatpush1.msra.mxu0 0.0
      %2245 = vmatprep.subr.mxu0 0.0
      %2246 = vmatpush1.msra.mxu0 0.0
      %2247 = vmatprep.subr.mxu0 0.0
      %2248 = vmatpush1.msra.mxu0 0.0
      %2249 = vmatprep.subr.mxu0 0.0
      %2250 = vmatpush1.msra.mxu0 0.0
      %2251 = vmatprep.subr.mxu0 0.0
      %2252 = vmatpush1.msra.mxu0 0.0
      %2253 = vmatprep.subr.mxu0 0.0
      %2254 = vmatpush1.msra.mxu0 0.0
      %2255 = vmatprep.subr.mxu0 0.0
      %2256 = vmatpush1.msra.mxu0 0.0
      %2257 = vmatprep.subr.mxu0 0.0
      %2258 = vmatpush1.msra.mxu0 0.0
      %2259 = vmatprep.subr.mxu0 0.0
      %2260 = vmatpush1.msra.mxu0 0.0
      %2261 = vmatprep.subr.mxu0 0.0
      %2262 = vmatpush1.msra.mxu0 0.0
      %2263 = vmatprep.subr.mxu0 0.0
      %2264 = vmatpush1.msra.mxu0 0.0
      %2265 = vmatprep.subr.mxu0 0.0
      %2266 = vmatpush1.msra.mxu0 0.0
      %2267 = vmatprep.subr.mxu0 0.0
      %2268 = vmatpush1.msra.mxu0 0.0
      %2269 = vmatprep.subr.mxu0 0.0
      %2270 = vmatpush1.msra.mxu0 0.0
      %2271 = vmatprep.subr.mxu0 0.0
      %2272 = vmatpush1.msra.mxu0 0.0
      %2273 = vmatprep.mubr.f32.mxu0 0.0
      %2274 = vmatmul.mubr.f32.gmra.mrb[0].mxu0 %v2198
      %v2275 = vpop.f32.mrb[0].mxu0
      %v2276 = vadd.f32 0.0, %v2275
      %v2277 = vpop.f32.mrb[0].mxu0
      %2278 = vmatprep.mubr.f32.mxu0 0.0
      %2279 = vmatmul.mubr.f32.gmra.mrb[0].mxu0 %v2201
      %v2280 = vpop.f32.mrb[0].mxu0
      %v2281 = vadd.f32 0.0, %v2280
      %v2282 = vpop.f32.mrb[0].mxu0
      %2283 = vmatprep.mubr.f32.mxu0 0.0
      %2284 = vmatmul.mubr.f32.gmra.mrb[0].mxu0 %v2204
      %v2285 = vpop.f32.mrb[0].mxu0
      %v2286 = vadd.f32 0.0, %v2285
      %v2287 = vpop.f32.mrb[0].mxu0
      %2288 = vmatprep.mubr.f32.mxu0 0.0
      %2289 = vmatmul.mubr.f32.gmra.mrb[0].mxu0 %v2207
      %v2290 = vpop.f32.mrb[0].mxu0
      %v2291 = vadd.f32 0.0, %v2290
      %v2292 = vpop.f32.mrb[0].mxu0
      %2293 = vdwg.mxu0
      %2298 = vrot.lane.b32.xlu0 %v2276, 96
      %v2299 = vpop.permute.xlu0 %2298
      %2300 = vrot.lane.b32.xlu0 %v2281, 96
      %v2301 = vpop.permute.xlu0 %2300
      %2302 = vrot.lane.b32.xlu0 %v2286, 96
      %v2303 = vpop.permute.xlu0 %2302
      %2304 = vrot.lane.b32.xlu0 %v2291, 96
      %v2305 = vpop.permute.xlu0 %2304
      %2310 = vst.msk [vmem:[#allocation2 + $0x8] sm:$0xff] %vm1228, %v2299
      %2311 = vst.msk [vmem:[#allocation2 + $0x18] sm:$0xff] %vm1228, %v2301
      %2312 = vst.msk [vmem:[#allocation2 + $0x28] sm:$0xff] %vm1228, %v2303
      %2313 = vst.msk [vmem:[#allocation2 + $0x38] sm:$0xff] %vm1228, %v2305
      %v2314 = vld [vmem:[%s225 + $0x38] sm:$0xff]
      %v2315 = vld [vmem:[%s225 + $0x78] sm:$0xff]
      %v2316 = vld [vmem:[%s225 + $0xb8] sm:$0xff]
      %v2317 = vld [vmem:[%s225 + $0xf8] sm:$0xff]
      %v2318 = vmul.f32 %v2314, %v382
      %v2319 = vmul.f32 %v2315, %v384
      %v2320 = vmul.f32 %v2316, %v386
      %v2321 = vmul.f32 %v2317, %v388
      %v2322 = vadd.f32 %v2318, %v402
      %v2323 = vadd.f32 %v2319, %v404
      %v2324 = vadd.f32 %v2320, %v406
      %v2325 = vadd.f32 %v2321, %v408
      %v2326 = vmax.f32 %v2322, 0.0
      %v2327 = vmax.f32 %v2323, 0.0
      %v2328 = vmax.f32 %v2324, 0.0
      %v2329 = vmax.f32 %v2325, 0.0
      %2334 = vrot.lane.b32.xlu0 %v2326, 64
      %v2335 = vpop.permute.xlu0 %2334
      %2336 = vrot.lane.b32.xlu0 %v2327, 64
      %v2337 = vpop.permute.xlu0 %2336
      %2338 = vrot.lane.b32.xlu0 %v2328, 64
      %v2339 = vpop.permute.xlu0 %2338
      %2340 = vrot.lane.b32.xlu0 %v2329, 64
      %v2341 = vpop.permute.xlu0 %2340
      %v2342 = vsel %vm270, %v2335, 0
      %v2344 = vsel %vm270, %v2337, 0
      %v2346 = vsel %vm270, %v2339, 0
      %v2348 = vsel %vm270, %v2341, 0
      %2350 = vmatprep.subr.mxu0 0.0
      %2351 = vmatpush1.msra.mxu0 %v246
      %2352 = vmatprep.subr.mxu0 0.0
      %2353 = vmatpush1.msra.mxu0 %v247
      %2354 = vmatprep.subr.mxu0 0.0
      %2355 = vmatpush1.msra.mxu0 %v248
      %2356 = vmatprep.subr.mxu0 0.0
      %2357 = vmatpush1.msra.mxu0 %v249
      %2358 = vmatprep.subr.mxu0 0.0
      %2359 = vmatpush1.msra.mxu0 %v250
      %2360 = vmatprep.subr.mxu0 0.0
      %2361 = vmatpush1.msra.mxu0 %v251
      %2362 = vmatprep.subr.mxu0 0.0
      %2363 = vmatpush1.msra.mxu0 %v252
      %2364 = vmatprep.subr.mxu0 0.0
      %2365 = vmatpush1.msra.mxu0 %v253
      %2366 = vmatprep.subr.mxu0 0.0
      %2367 = vmatpush1.msra.mxu0 0.0
      %2368 = vmatprep.subr.mxu0 0.0
      %2369 = vmatpush1.msra.mxu0 0.0
      %2370 = vmatprep.subr.mxu0 0.0
      %2371 = vmatpush1.msra.mxu0 0.0
      %2372 = vmatprep.subr.mxu0 0.0
      %2373 = vmatpush1.msra.mxu0 0.0
      %2374 = vmatprep.subr.mxu0 0.0
      %2375 = vmatpush1.msra.mxu0 0.0
      %2376 = vmatprep.subr.mxu0 0.0
      %2377 = vmatpush1.msra.mxu0 0.0
      %2378 = vmatprep.subr.mxu0 0.0
      %2379 = vmatpush1.msra.mxu0 0.0
      %2380 = vmatprep.subr.mxu0 0.0
      %2381 = vmatpush1.msra.mxu0 0.0
      %2382 = vmatprep.subr.mxu0 0.0
      %2383 = vmatpush1.msra.mxu0 0.0
      %2384 = vmatprep.subr.mxu0 0.0
      %2385 = vmatpush1.msra.mxu0 0.0
      %2386 = vmatprep.subr.mxu0 0.0
      %2387 = vmatpush1.msra.mxu0 0.0
      %2388 = vmatprep.subr.mxu0 0.0
      %2389 = vmatpush1.msra.mxu0 0.0
      %2390 = vmatprep.subr.mxu0 0.0
      %2391 = vmatpush1.msra.mxu0 0.0
      %2392 = vmatprep.subr.mxu0 0.0
      %2393 = vmatpush1.msra.mxu0 0.0
      %2394 = vmatprep.subr.mxu0 0.0
      %2395 = vmatpush1.msra.mxu0 0.0
      %2396 = vmatprep.subr.mxu0 0.0
      %2397 = vmatpush1.msra.mxu0 0.0
      %2398 = vmatprep.subr.mxu0 0.0
      %2399 = vmatpush1.msra.mxu0 0.0
      %2400 = vmatprep.subr.mxu0 0.0
      %2401 = vmatpush1.msra.mxu0 0.0
      %2402 = vmatprep.subr.mxu0 0.0
      %2403 = vmatpush1.msra.mxu0 0.0
      %2404 = vmatprep.subr.mxu0 0.0
      %2405 = vmatpush1.msra.mxu0 0.0
      %2406 = vmatprep.subr.mxu0 0.0
      %2407 = vmatpush1.msra.mxu0 0.0
      %2408 = vmatprep.subr.mxu0 0.0
      %2409 = vmatpush1.msra.mxu0 0.0
      %2410 = vmatprep.subr.mxu0 0.0
      %2411 = vmatpush1.msra.mxu0 0.0
      %2412 = vmatprep.subr.mxu0 0.0
      %2413 = vmatpush1.msra.mxu0 0.0
      %2414 = vmatprep.mubr.f32.mxu0 0.0
      %2415 = vmatmul.mubr.f32.gmra.mrb[0].mxu0 %v2342
      %v2416 = vpop.f32.mrb[0].mxu0
      %v2417 = vadd.f32 0.0, %v2416
      %v2418 = vpop.f32.mrb[0].mxu0
      %2419 = vmatprep.mubr.f32.mxu0 0.0
      %2420 = vmatmul.mubr.f32.gmra.mrb[0].mxu0 %v2344
      %v2421 = vpop.f32.mrb[0].mxu0
      %v2422 = vadd.f32 0.0, %v2421
      %v2423 = vpop.f32.mrb[0].mxu0
      %2424 = vmatprep.mubr.f32.mxu0 0.0
      %2425 = vmatmul.mubr.f32.gmra.mrb[0].mxu0 %v2346
      %v2426 = vpop.f32.mrb[0].mxu0
      %v2427 = vadd.f32 0.0, %v2426
      %v2428 = vpop.f32.mrb[0].mxu0
      %2429 = vmatprep.mubr.f32.mxu0 0.0
      %2430 = vmatmul.mubr.f32.gmra.mrb[0].mxu0 %v2348
      %v2431 = vpop.f32.mrb[0].mxu0
      %v2432 = vadd.f32 0.0, %v2431
      %v2433 = vpop.f32.mrb[0].mxu0
      %2434 = vdwg.mxu0
      %2439 = vrot.lane.b32.xlu0 %v2417, 112
      %v2440 = vpop.permute.xlu0 %2439
      %2441 = vrot.lane.b32.xlu0 %v2422, 112
      %v2442 = vpop.permute.xlu0 %2441
      %2443 = vrot.lane.b32.xlu0 %v2427, 112
      %v2444 = vpop.permute.xlu0 %2443
      %2445 = vrot.lane.b32.xlu0 %v2432, 112
      %v2446 = vpop.permute.xlu0 %2445
      %2451 = vst.msk [vmem:[#allocation2 + $0x8] sm:$0xff] %vm1370, %v2440
      %2452 = vst.msk [vmem:[#allocation2 + $0x18] sm:$0xff] %vm1370, %v2442
      %2453 = vst.msk [vmem:[#allocation2 + $0x28] sm:$0xff] %vm1370, %v2444
      %2454 = vst.msk [vmem:[#allocation2 + $0x38] sm:$0xff] %vm1370, %v2446
      %v2455 = vld [vmem:[%s3] sm:$0xff]
      %v2456 = vld [vmem:[%s3 + $0x8] sm:$0xff]
      %v2457 = vld [vmem:[#allocation2] sm:$0xff]
      %v2458 = vld [vmem:[#allocation2 + $0x8] sm:$0xff]
      %v2459 = vld [vmem:[#allocation2 + $0x10] sm:$0xff]
      %v2460 = vld [vmem:[#allocation2 + $0x18] sm:$0xff]
      %v2461 = vld [vmem:[#allocation2 + $0x20] sm:$0xff]
      %v2462 = vld [vmem:[#allocation2 + $0x28] sm:$0xff]
      %v2463 = vld [vmem:[#allocation2 + $0x30] sm:$0xff]
      %v2464 = vld [vmem:[#allocation2 + $0x38] sm:$0xff]
      %vm2465 = vcmask 261120
      %v2467 = vsel %vm2465, %v2455, 0
      %v2470 = vsel %vm2465, %v2456, 0
      %2472 = vmatprep.subr.mxu0 %v2458
      %2473 = vmatpush1.msra.mxu0 %v2457
      %2474 = vmatprep.subr.mxu0 %v2460
      %2475 = vmatpush1.msra.mxu0 %v2459
      %2476 = vmatprep.subr.mxu0 %v2462
      %2477 = vmatpush1.msra.mxu0 %v2461
      %2478 = vmatprep.subr.mxu0 %v2464
      %2479 = vmatpush1.msra.mxu0 %v2463
      %2480 = vmatprep.subr.mxu0 0.0
      %2481 = vmatpush1.msra.mxu0 0.0
      %2482 = vmatprep.subr.mxu0 0.0
      %2483 = vmatpush1.msra.mxu0 0.0
      %2484 = vmatprep.subr.mxu0 0.0
      %2485 = vmatpush1.msra.mxu0 0.0
      %2486 = vmatprep.subr.mxu0 0.0
      %2487 = vmatpush1.msra.mxu0 0.0
      %2488 = vmatprep.subr.mxu0 0.0
      %2489 = vmatpush1.msra.mxu0 0.0
      %2490 = vmatprep.subr.mxu0 0.0
      %2491 = vmatpush1.msra.mxu0 0.0
      %2492 = vmatprep.subr.mxu0 0.0
      %2493 = vmatpush1.msra.mxu0 0.0
      %2494 = vmatprep.subr.mxu0 0.0
      %2495 = vmatpush1.msra.mxu0 0.0
      %2496 = vmatprep.subr.mxu0 0.0
      %2497 = vmatpush1.msra.mxu0 0.0
      %2498 = vmatprep.subr.mxu0 0.0
      %2499 = vmatpush1.msra.mxu0 0.0
      %2500 = vmatprep.subr.mxu0 0.0
      %2501 = vmatpush1.msra.mxu0 0.0
      %2502 = vmatprep.subr.mxu0 0.0
      %2503 = vmatpush1.msra.mxu0 0.0
      %2504 = vmatprep.subr.mxu0 0.0
      %2505 = vmatpush1.msra.mxu0 0.0
      %2506 = vmatprep.subr.mxu0 0.0
      %2507 = vmatpush1.msra.mxu0 0.0
      %2508 = vmatprep.subr.mxu0 0.0
      %2509 = vmatpush1.msra.mxu0 0.0
      %2510 = vmatprep.subr.mxu0 0.0
      %2511 = vmatpush1.msra.mxu0 0.0
      %2512 = vmatprep.subr.mxu0 0.0
      %2513 = vmatpush1.msra.mxu0 0.0
      %2514 = vmatprep.subr.mxu0 0.0
      %2515 = vmatpush1.msra.mxu0 0.0
      %2516 = vmatprep.subr.mxu0 0.0
      %2517 = vmatpush1.msra.mxu0 0.0
      %2518 = vmatprep.subr.mxu0 0.0
      %2519 = vmatpush1.msra.mxu0 0.0
      %2520 = vmatprep.subr.mxu0 0.0
      %2521 = vmatpush1.msra.mxu0 0.0
      %2522 = vmatprep.subr.mxu0 0.0
      %2523 = vmatpush1.msra.mxu0 0.0
      %2524 = vmatprep.subr.mxu0 0.0
      %2525 = vmatpush1.msra.mxu0 0.0
      %2526 = vmatprep.subr.mxu0 0.0
      %2527 = vmatpush1.msra.mxu0 0.0
      %2528 = vmatprep.subr.mxu0 0.0
      %2529 = vmatpush1.msra.mxu0 0.0
      %2530 = vmatprep.subr.mxu0 0.0
      %2531 = vmatpush1.msra.mxu0 0.0
      %2532 = vmatprep.subr.mxu0 0.0
      %2533 = vmatpush1.msra.mxu0 0.0
      %2534 = vmatprep.subr.mxu0 0.0
      %2535 = vmatpush1.msra.mxu0 0.0
      %2536 = vmatprep.mubr.f32.mxu0 0.0
      %2537 = vmatmul.mubr.f32.gmra.mrb[0].mxu0 %v2467
      %v2538 = vpop.f32.mrb[0].mxu0
      %v2539 = vadd.f32 0.0, %v2538
      %v2540 = vpop.f32.mrb[0].mxu0
      %v2541 = vadd.f32 0.0, %v2540
      %2542 = vmatprep.mubr.f32.mxu0 0.0
      %2543 = vmatmul.mubr.f32.gmra.mrb[0].mxu0 %v2470
      %v2544 = vpop.f32.mrb[0].mxu0
      %v2545 = vadd.f32 0.0, %v2544
      %v2546 = vpop.f32.mrb[0].mxu0
      %v2547 = vadd.f32 0.0, %v2546
      %2548 = vdwg.mxu0
      %2549 = vst [vmem:[%s235] sm:$0xff] %v2539
      %2550 = vst [vmem:[%s235 + $0x8] sm:$0xff] %v2541
      %2551 = vst [vmem:[%s235 + $0x10] sm:$0xff] %v2545
      %2552 = vst [vmem:[%s235 + $0x18] sm:$0xff] %v2547
      %s2553 = smul.u32 2, %s20
      %p2554 = scmp.lt.s32.totalorder %s19, 1
      %s2555 = scalar_select %p2554, %s19, 1
      %p2556 = scmp.lt.s32.totalorder %s2553, 1
      %s2557 = scalar_select %p2556, %s2553, 1
      %s2558 = smul.addr %s2555, 4
      %s2559 = sadd.s32 %s2557, %s2558
      %s2560 = smul.addr %s2559, 8
      %s2561 = scalar_lea.vmem %s4, %s2560
      // Predicated region
      $region37: #{transition_forward.1} parent=35 // pred_check
        %p2562 = pneg %p138
      $region38: #{transition_forward.1} parent=35 // pred_check_branch
        %2564 = sbr.rel (%p2562) target = $region40
      $region39: #{transition_forward.1} parent=35 // pred_region
        %s2565 = smul.u32 2, %s20
      $region40: #{transition_forward.1} parent=35 // pred_fallthru
        _
    $region36: #{transition_forward.1} parent=5 // pred_fallthru
      _
    %p2566 = scmp.le.s32.totalorder 2, %s10
    // Predicated region
    $region41: #{transition_forward.1} parent=5 // pred_check
      %p2567 = pneg %p2566
    $region42: #{transition_forward.1} parent=5 // pred_check_branch
      %2569 = sbr.rel (%p2567) target = $region44
    $region43: #{transition_forward.1} parent=5 // pred_region
      %s2570 = ssub.s32 %s10, 2
      // Predicated region
      $region45: #{transition_forward.1} parent=43 // pred_check
        %p2571 = pneg %p144
      $region46: #{transition_forward.1} parent=43 // pred_check_branch
        %2573 = sbr.rel (%p2571) target = $region48
      $region47: #{transition_forward.1} parent=43 // pred_region
        %s2574 = smul.u32 2, %s22
        %p2575 = scmp.lt.s32.totalorder %s21, 1
        %s2576 = scalar_select %p2575, %s21, 1
        %p2577 = scmp.lt.s32.totalorder %s2574, 1
        %s2578 = scalar_select %p2577, %s2574, 1
        %s2579 = smul.addr %s2576, 4
        %s2580 = sadd.s32 %s2578, %s2579
        %s2581 = smul.addr %s2580, 8
        %s2582 = scalar_lea.vmem %s4, %s2581
      $region48: #{transition_forward.1} parent=43 // pred_fallthru
        _
    $region44: #{transition_forward.1} parent=5 // pred_fallthru
      _
  $region6: #{transition_forward.1} parent=0 // loop_footer
    %s14 = sadd.s32 1, %s10
  $region7: #{transition_forward.1} parent=0 // loop_footer_branch
    %9 = sbr.rel target = $region3
  $region8: #{transition_forward.1} parent=0 // loop_exit
    _

</llo_original>
